<compile_context>
chip_gen: v7x
topology: tpu7x:2x2x1
jax: 0.10.0
libtpu: 0.0.40
codegen_flags: <defaults>
</compile_context>

<pallas_src>
import numpy as np
import jax
import jax.numpy as jnp
from jax import lax
from jax.experimental import pallas as pl
from jax.experimental.pallas import tpu as pltpu


# ----------------------------------------------------------------------------
# Single fused kernel: dual LSTM encoders + gating + attention + output head
# ----------------------------------------------------------------------------
def _attention_kernel(t2d_ref, i2d_ref, wih_t_ref, wih_i_ref, b_ref, whh_ref,
                      w1_ref, b1_ref, wti_ref, bti_ref,
                      wa1_ref, ba1_ref, wa2_ref, ba2_ref,
                      wa3_ref, ba3_ref, watt_ref, batt_ref,
                      wslab_ref, bslab_ref, slab_ref):
    f32 = jnp.float32
    bf16 = jnp.bfloat16
    SB = t2d_ref.shape[0]             # S * Bp (time-major, batch padded to x8)
    HP, GP = whh_ref.shape            # padded hidden width (128), 4*HP gate lanes
    HP3 = 3 * HP
    Bp = slab_ref.shape[0]
    S = SB // Bp
    H2 = w1_ref.shape[1]              # 2 * hidden  ([text | image])
    H = H2 // 2

    # --- hoisted input projection: all timesteps of both encoders, one-time,
    #     off the serial critical path -> keep f32 for tight agreement ---
    gx2d = (jnp.dot(t2d_ref[...], wih_t_ref[...], preferred_element_type=f32)
            + jnp.dot(i2d_ref[...], wih_i_ref[...], preferred_element_type=f32)
            + b_ref[...])
    # Time-major (S, Bp, GP). Bp % 8 == 0 -> layout-preserving reshape, and
    # gx[t] below is a free vreg-tile select (no per-step mid-axis slicing).
    gx = gx2d.reshape(S, Bp, GP)

    whh = whh_ref[...]                # bf16 recurrent weight, hoisted load

    # --- peeled t = 0: h = c = 0, skip h @ whh and f * c ---
    g0 = gx[0]
    sg = jax.nn.sigmoid(g0[:, :HP3])          # i | f | o lanes only
    gg = jnp.tanh(g0[:, HP3:])                # g lanes only
    c = sg[:, 0:HP] * gg
    h = sg[:, 2 * HP:HP3] * jnp.tanh(c)

    # --- t = 1 .. S-1, fully unrolled; bf16 MXU operands, f32 accumulate ---
    for t in range(1, S):
        gates = gx[t] + jnp.dot(h.astype(bf16), whh, preferred_element_type=f32)
        sg = jax.nn.sigmoid(gates[:, :HP3])   # vreg-aligned slices, no rotates
        gg = jnp.tanh(gates[:, HP3:])
        i = sg[:, 0:HP]
        f = sg[:, HP:2 * HP]
        o = sg[:, 2 * HP:HP3]
        c = f * c + i * gg
        h = o * jnp.tanh(c)

    # --- linear_1 of both encoders (block-diagonal, zero-padded rows) ---
    th_ih = jnp.dot(h, w1_ref[...], preferred_element_type=f32) + b1_ref[...]

    # --- gating: [sigmoid(fc_text(th)) | sigmoid(fc_img(ih))] (block-diag) ---
    gate = jax.nn.sigmoid(jnp.dot(th_ih, wti_ref[...], preferred_element_type=f32)
                          + bti_ref[...])
    mh1 = th_ih * gate                # == cat([th*tw, ih*iw], dim=1)

    # --- attention MLP + fc_att ---
    y1 = jnp.maximum(jnp.dot(mh1, wa1_ref[...], preferred_element_type=f32) + ba1_ref[...], 0.0)
    y2 = jnp.maximum(jnp.dot(y1, wa2_ref[...], preferred_element_type=f32) + ba2_ref[...], 0.0)
    y3 = jnp.maximum(jnp.dot(y2, wa3_ref[...], preferred_element_type=f32) + ba3_ref[...], 0.0)
    att = jnp.dot(y3, watt_ref[...], preferred_element_type=f32) + batt_ref[...]   # (Bp, 2)

    # --- matmul(stack([th, ih], 2), att[..., None]).squeeze(2) ---
    fused = th_ih[:, 0:H] * att[:, 0:1] + th_ih[:, H:H2] * att[:, 1:2]

    # --- fused epilogue: [fused | fused @ wo + bo | 0] in one MXU op,
    #     lane-dense (Bp, 128) slab, single unmasked store ---
    slab_ref[...] = (jnp.dot(fused, wslab_ref[...], preferred_element_type=f32)
                     + bslab_ref[...])


# ----------------------------------------------------------------------------
# One-time host-side repacking of per-module weights into the fused layout
# ----------------------------------------------------------------------------
def pack_attention_params(params):
    te = {k: np.asarray(v, np.float32) for k, v in params["text_enc"].items()}
    ie = {k: np.asarray(v, np.float32) for k, v in params["image_enc"].items()}
    fu = {k: np.asarray(v, np.float32) for k, v in params["fusion"].items()}
    H = te["whh"].shape[0]
    Dt, Di = te["wih"].shape[0], ie["wih"].shape[0]
    H2 = 2 * H
    out_dim = fu["wo"].shape[1]
    HP = max(128, ((H2 + 127) // 128) * 128)   # padded [text | image | 0] hidden width
    GP = 4 * HP                                # gate blocks [i | f | o | g], each HP lanes

    # Kernel gate-block order [i, f, o, g]; per-encoder source order is PyTorch's [i, f, g, o].
    gate_src = (0, 1, 3, 2)
    wih_t = np.zeros((Dt, GP), np.float32)
    wih_i = np.zeros((Di, GP), np.float32)
    whh = np.zeros((HP, GP), np.float32)
    b = np.zeros((1, GP), np.float32)
    for kdst, ksrc in enumerate(gate_src):
        src = slice(ksrc * H, (ksrc + 1) * H)
        ct = slice(kdst * HP, kdst * HP + H)         # text lanes of this gate block
        ci = slice(kdst * HP + H, kdst * HP + H2)    # image lanes of this gate block
        wih_t[:, ct] = te["wih"][:, src]
        wih_i[:, ci] = ie["wih"][:, src]
        whh[0:H, ct] = te["whh"][:, src]
        whh[H:H2, ci] = ie["whh"][:, src]
        b[:, ct] = te["b"][:, src]
        b[:, ci] = ie["b"][:, src]

    def blockdiag(a, c):
        o = np.zeros((a.shape[0] + c.shape[0], a.shape[1] + c.shape[1]), np.float32)
        o[:a.shape[0], :a.shape[1]] = a
        o[a.shape[0]:, a.shape[1]:] = c
        return o

    w1 = np.zeros((HP, H2), np.float32)     # linear_1 of both encoders (pad rows zero)
    w1[0:H, 0:H] = te["w1"]
    w1[H:H2, H:H2] = ie["w1"]

    slab_w = max(128, ((H + out_dim + 127) // 128) * 128)
    wslab = np.zeros((H, slab_w), np.float32)       # [I_H | wo | 0]
    wslab[:, :H] = np.eye(H, dtype=np.float32)
    wslab[:, H:H + out_dim] = fu["wo"]
    bslab = np.zeros((1, slab_w), np.float32)       # [0 | bo | 0]
    bslab[:, H:H + out_dim] = fu["bo"]

    packed = {
        "wih_t": wih_t, "wih_i": wih_i, "b": b,
        "whh": jnp.asarray(whh, jnp.bfloat16),      # bf16 MXU operand (recurrent weight)
        "w1": w1,
        "b1": np.concatenate([te["b1"], ie["b1"]], axis=1),
        "wti": blockdiag(fu["wt"], fu["wi"]),
        "bti": np.concatenate([fu["bt"], fu["bi"]], axis=1),
        "wa1": np.concatenate([fu["wa1t"], fu["wa1i"]], axis=0),
        "ba1": fu["ba1"], "wa2": fu["wa2"], "ba2": fu["ba2"],
        "wa3": fu["wa3"], "ba3": fu["ba3"],
        "watt": fu["watt"], "batt": fu["batt"],
        "wslab": wslab, "bslab": bslab,
        "bo": fu["bo"],   # kept only so the wrapper can read out_dim statically
    }
    return {k: jnp.asarray(v) for k, v in packed.items()}


@jax.jit
def attention_forward(text_input, image_input, packed):
    B, S, Dt = text_input.shape
    Di = image_input.shape[2]
    H = packed["wa2"].shape[0]
    out_dim = packed["bo"].shape[1]
    slab_w = packed["wslab"].shape[1]
    Bp = ((B + 7) // 8) * 8   # sublane-aligned batch -> layout-preserving in-kernel reshape

    def to_time_major(x, d):
        x = jnp.transpose(x.astype(jnp.float32), (1, 0, 2))    # (S, B, d)
        if Bp != B:
            x = jnp.pad(x, ((0, 0), (0, Bp - B), (0, 0)))
        return x.reshape(S * Bp, d)

    t2d = to_time_major(text_input, Dt)
    i2d = to_time_major(image_input, Di)

    vmem = pl.BlockSpec(memory_space=pltpu.MemorySpace.VMEM)
    args = (t2d, i2d, packed["wih_t"], packed["wih_i"], packed["b"], packed["whh"],
            packed["w1"], packed["b1"], packed["wti"], packed["bti"],
            packed["wa1"], packed["ba1"], packed["wa2"], packed["ba2"],
            packed["wa3"], packed["ba3"], packed["watt"], packed["batt"],
            packed["wslab"], packed["bslab"])
    slab = pl.pallas_call(
        _attention_kernel,
        out_shape=jax.ShapeDtypeStruct((Bp, slab_w), jnp.float32),
        in_specs=[vmem] * len(args),
        out_specs=vmem,
    )(*args)
    return slab[:B, :H], slab[:B, H:H + out_dim]


# ----------------------------------------------------------------------------
# Deterministic parameter init (synthetic weights, PyTorch-like structure)
# ----------------------------------------------------------------------------
def _u(key, shape, scale):
    return jax.random.uniform(key, shape, jnp.float32, -scale, scale)


def init_lstm_encoder_params(key, in_dim, H):
    ks = jax.random.split(key, 6)
    s = 1.0 / np.sqrt(H)
    return {
        "wih": _u(ks[0], (in_dim, 4 * H), s),   # gate order: i, f, g, o (PyTorch)
        "whh": _u(ks[1], (H, 4 * H), s),
        "b":   _u(ks[2], (1, 4 * H), s),        # b_ih + b_hh combined
        "w1":  _u(ks[3], (H, H), s),
        "b1":  _u(ks[4], (1, H), s),
    }


def init_fusion_params(key, H, out_dim):
    ks = jax.random.split(key, 16)
    s = 1.0 / np.sqrt(H)
    return {
        "wt": _u(ks[0], (H, H), s),   "bt": _u(ks[1], (1, H), s),
        "wi": _u(ks[2], (H, H), s),   "bi": _u(ks[3], (1, H), s),
        "wa1t": _u(ks[4], (H, H), s), "wa1i": _u(ks[5], (H, H), s), "ba1": _u(ks[6], (1, H), s),
        "wa2": _u(ks[7], (H, H), s),  "ba2": _u(ks[8], (1, H), s),
        "wa3": _u(ks[9], (H, H), s),  "ba3": _u(ks[10], (1, H), s),
        "watt": _u(ks[11], (H, 2), s), "batt": _u(ks[12], (1, 2), s),
        "wo": _u(ks[13], (H, out_dim), s), "bo": _u(ks[14], (1, out_dim), s),
    }


# ----------------------------------------------------------------------------
# Pure-JAX f32 reference (for correctness check)
# ----------------------------------------------------------------------------
def ref_lstm_encoder(x, p):
    B, S, D = x.shape
    H = p["whh"].shape[0]

    def step(carry, x_t):
        h, c = carry
        g = x_t @ p["wih"] + h @ p["whh"] + p["b"][0]
        i = jax.nn.sigmoid(g[:, 0:H]); f = jax.nn.sigmoid(g[:, H:2 * H])
        gg = jnp.tanh(g[:, 2 * H:3 * H]); o = jax.nn.sigmoid(g[:, 3 * H:4 * H])
        c = f * c + i * gg
        h = o * jnp.tanh(c)
        return (h, c), None

    (h, _), _ = lax.scan(step, (jnp.zeros((B, H)), jnp.zeros((B, H))),
                         jnp.transpose(x.astype(jnp.float32), (1, 0, 2)))
    return h @ p["w1"] + p["b1"][0]


def ref_forward(text_input, image_input, params):
    th = ref_lstm_encoder(text_input, params["text_enc"])
    ih = ref_lstm_encoder(image_input, params["image_enc"])
    p = params["fusion"]
    tw = jax.nn.sigmoid(th @ p["wt"] + p["bt"][0])
    iw = jax.nn.sigmoid(ih @ p["wi"] + p["bi"][0])
    mh1 = jnp.concatenate([th * tw, ih * iw], axis=1)
    w1 = jnp.concatenate([p["wa1t"], p["wa1i"]], axis=0)
    y1 = jax.nn.relu(mh1 @ w1 + p["ba1"][0])
    y2 = jax.nn.relu(y1 @ p["wa2"] + p["ba2"][0])
    y3 = jax.nn.relu(y2 @ p["wa3"] + p["ba3"][0])
    att = (y3 @ p["watt"] + p["batt"][0])[:, :, None]              # (B, 2, 1)
    mh2 = jnp.stack([th, ih], axis=2)                              # (B, H, 2)
    fused = jnp.matmul(mh2, att)[:, :, 0]                          # (B, H)
    out = fused @ p["wo"] + p["bo"][0]
    return fused, out


if __name__ == "__main__":
    B, S = 2, 8
    text_dim, image_dim = 32, 16
    hidden_dim, output_dim = 32, 2

    key = jax.random.PRNGKey(0)
    k_txt, k_img, k_te, k_ie, k_fu = jax.random.split(key, 5)

    text_input = jax.random.normal(k_txt, (B, S, text_dim), jnp.float32)
    image_input = jax.random.normal(k_img, (B, S, image_dim), jnp.float32)

    params = {
        "text_enc": init_lstm_encoder_params(k_te, text_dim, hidden_dim),
        "image_enc": init_lstm_encoder_params(k_ie, image_dim, hidden_dim),
        "fusion": init_fusion_params(k_fu, hidden_dim, output_dim),
    }
    packed = pack_attention_params(params)

    fused_feat, out = attention_forward(text_input, image_input, packed)
    jax.block_until_ready((fused_feat, out))

    ref_fused, ref_out = ref_forward(text_input, image_input, params)
    # Tolerance relaxed from 2e-3 to 1e-2: the recurrent h @ whh now uses bf16
    # MXU operands (per perf review); everything else stays f32.
    np.testing.assert_allclose(np.asarray(fused_feat), np.asarray(ref_fused), rtol=1e-2, atol=1e-2)
    np.testing.assert_allclose(np.asarray(out), np.asarray(ref_out), rtol=1e-2, atol=1e-2)
    assert fused_feat.shape == (B, hidden_dim) and out.shape == (B, output_dim)

    print("KERNEL_OK")
</pallas_src>

<mosaic_0001>
module attributes {stable_mosaic.version = 11 : i64} {
  func.func @_attention_kernel(%arg0: memref<64x32xf32, #tpu.memory_space<vmem>>, %arg1: memref<64x16xf32, #tpu.memory_space<vmem>>, %arg2: memref<32x512xf32, #tpu.memory_space<vmem>>, %arg3: memref<16x512xf32, #tpu.memory_space<vmem>>, %arg4: memref<1x512xf32, #tpu.memory_space<vmem>>, %arg5: memref<128x512xbf16, #tpu.memory_space<vmem>>, %arg6: memref<128x64xf32, #tpu.memory_space<vmem>>, %arg7: memref<1x64xf32, #tpu.memory_space<vmem>>, %arg8: memref<64x64xf32, #tpu.memory_space<vmem>>, %arg9: memref<1x64xf32, #tpu.memory_space<vmem>>, %arg10: memref<64x32xf32, #tpu.memory_space<vmem>>, %arg11: memref<1x32xf32, #tpu.memory_space<vmem>>, %arg12: memref<32x32xf32, #tpu.memory_space<vmem>>, %arg13: memref<1x32xf32, #tpu.memory_space<vmem>>, %arg14: memref<32x32xf32, #tpu.memory_space<vmem>>, %arg15: memref<1x32xf32, #tpu.memory_space<vmem>>, %arg16: memref<32x2xf32, #tpu.memory_space<vmem>>, %arg17: memref<1x2xf32, #tpu.memory_space<vmem>>, %arg18: memref<32x128xf32, #tpu.memory_space<vmem>>, %arg19: memref<1x128xf32, #tpu.memory_space<vmem>>, %arg20: memref<8x128xf32, #tpu.memory_space<vmem>>) attributes {dimension_semantics = [], scalar_prefetch = 0 : i64, scratch_operands = 0 : i64, tpu.core_type = #tpu.core_type<tc>} {
    %c0 = arith.constant 0 : index
    %c0_0 = arith.constant 0 : index
    %0 = vector.load %arg0[%c0, %c0_0] : memref<64x32xf32, #tpu.memory_space<vmem>>, vector<64x32xf32>
    %c0_1 = arith.constant 0 : index
    %c0_2 = arith.constant 0 : index
    %1 = vector.load %arg2[%c0_1, %c0_2] : memref<32x512xf32, #tpu.memory_space<vmem>>, vector<32x512xf32>
    %cst = arith.constant dense<0.000000e+00> : vector<64x512xf32>
    %2 = tpu.matmul %0, %1, %cst {dimension_numbers = #tpu.dot_dimension_numbers<[1], [0], [0], [1], [0, 0, 1, 1], [], []>} : vector<64x32xf32>, vector<32x512xf32>, vector<64x512xf32> -> vector<64x512xf32>
    %c0_3 = arith.constant 0 : index
    %c0_4 = arith.constant 0 : index
    %3 = vector.load %arg1[%c0_3, %c0_4] : memref<64x16xf32, #tpu.memory_space<vmem>>, vector<64x16xf32>
    %c0_5 = arith.constant 0 : index
    %c0_6 = arith.constant 0 : index
    %4 = vector.load %arg3[%c0_5, %c0_6] : memref<16x512xf32, #tpu.memory_space<vmem>>, vector<16x512xf32>
    %cst_7 = arith.constant dense<0.000000e+00> : vector<64x512xf32>
    %5 = tpu.matmul %3, %4, %cst_7 {dimension_numbers = #tpu.dot_dimension_numbers<[1], [0], [0], [1], [0, 0, 1, 1], [], []>} : vector<64x16xf32>, vector<16x512xf32>, vector<64x512xf32> -> vector<64x512xf32>
    %6 = arith.addf %2, %5 : vector<64x512xf32>
    %c0_8 = arith.constant 0 : index
    %c0_9 = arith.constant 0 : index
    %7 = vector.load %arg4[%c0_8, %c0_9] : memref<1x512xf32, #tpu.memory_space<vmem>>, vector<1x512xf32>
    %8 = vector.broadcast %7 : vector<1x512xf32> to vector<64x512xf32>
    %9 = arith.addf %6, %8 : vector<64x512xf32>
    %10 = vector.shape_cast %9 : vector<64x512xf32> to vector<8x8x512xf32>
    %c0_10 = arith.constant 0 : index
    %c0_11 = arith.constant 0 : index
    %11 = vector.load %arg5[%c0_10, %c0_11] : memref<128x512xbf16, #tpu.memory_space<vmem>>, vector<128x512xbf16>
    %12 = vector.extract_strided_slice %10 {offsets = [0, 0, 0], sizes = [1, 8, 512], strides = [1, 1, 1]} : vector<8x8x512xf32> to vector<1x8x512xf32>
    %13 = vector.shape_cast %12 : vector<1x8x512xf32> to vector<8x512xf32>
    %14 = vector.extract_strided_slice %13 {offsets = [0, 0], sizes = [8, 384], strides = [1, 1]} : vector<8x512xf32> to vector<8x384xf32>
    %15 = arith.negf %14 : vector<8x384xf32>
    %16 = math.exp %15 : vector<8x384xf32>
    %cst_12 = arith.constant 1.000000e+00 : f32
    %17 = vector.broadcast %cst_12 : f32 to vector<8x384xf32>
    %18 = arith.addf %17, %16 : vector<8x384xf32>
    %19 = arith.divf %17, %18 : vector<8x384xf32>
    %20 = vector.extract_strided_slice %13 {offsets = [0, 384], sizes = [8, 128], strides = [1, 1]} : vector<8x512xf32> to vector<8x128xf32>
    %21 = math.tanh %20 : vector<8x128xf32>
    %22 = vector.extract_strided_slice %19 {offsets = [0, 0], sizes = [8, 128], strides = [1, 1]} : vector<8x384xf32> to vector<8x128xf32>
    %23 = arith.mulf %22, %21 : vector<8x128xf32>
    %24 = vector.extract_strided_slice %19 {offsets = [0, 256], sizes = [8, 128], strides = [1, 1]} : vector<8x384xf32> to vector<8x128xf32>
    %25 = math.tanh %23 : vector<8x128xf32>
    %26 = arith.mulf %24, %25 : vector<8x128xf32>
    %27 = vector.extract_strided_slice %10 {offsets = [1, 0, 0], sizes = [1, 8, 512], strides = [1, 1, 1]} : vector<8x8x512xf32> to vector<1x8x512xf32>
    %28 = vector.shape_cast %27 : vector<1x8x512xf32> to vector<8x512xf32>
    %29 = arith.truncf %26 : vector<8x128xf32> to vector<8x128xbf16>
    %cst_13 = arith.constant dense<0.000000e+00> : vector<8x512xf32>
    %30 = tpu.matmul %29, %11, %cst_13 {dimension_numbers = #tpu.dot_dimension_numbers<[1], [0], [0], [1], [0, 0, 1, 1], [], []>} : vector<8x128xbf16>, vector<128x512xbf16>, vector<8x512xf32> -> vector<8x512xf32>
    %31 = arith.addf %28, %30 : vector<8x512xf32>
    %32 = vector.extract_strided_slice %31 {offsets = [0, 0], sizes = [8, 384], strides = [1, 1]} : vector<8x512xf32> to vector<8x384xf32>
    %33 = arith.negf %32 : vector<8x384xf32>
    %34 = math.exp %33 : vector<8x384xf32>
    %cst_14 = arith.constant 1.000000e+00 : f32
    %35 = vector.broadcast %cst_14 : f32 to vector<8x384xf32>
    %36 = arith.addf %35, %34 : vector<8x384xf32>
    %37 = arith.divf %35, %36 : vector<8x384xf32>
    %38 = vector.extract_strided_slice %31 {offsets = [0, 384], sizes = [8, 128], strides = [1, 1]} : vector<8x512xf32> to vector<8x128xf32>
    %39 = math.tanh %38 : vector<8x128xf32>
    %40 = vector.extract_strided_slice %37 {offsets = [0, 0], sizes = [8, 128], strides = [1, 1]} : vector<8x384xf32> to vector<8x128xf32>
    %41 = vector.extract_strided_slice %37 {offsets = [0, 128], sizes = [8, 128], strides = [1, 1]} : vector<8x384xf32> to vector<8x128xf32>
    %42 = vector.extract_strided_slice %37 {offsets = [0, 256], sizes = [8, 128], strides = [1, 1]} : vector<8x384xf32> to vector<8x128xf32>
    %43 = arith.mulf %41, %23 : vector<8x128xf32>
    %44 = arith.mulf %40, %39 : vector<8x128xf32>
    %45 = arith.addf %43, %44 : vector<8x128xf32>
    %46 = math.tanh %45 : vector<8x128xf32>
    %47 = arith.mulf %42, %46 : vector<8x128xf32>
    %48 = vector.extract_strided_slice %10 {offsets = [2, 0, 0], sizes = [1, 8, 512], strides = [1, 1, 1]} : vector<8x8x512xf32> to vector<1x8x512xf32>
    %49 = vector.shape_cast %48 : vector<1x8x512xf32> to vector<8x512xf32>
    %50 = arith.truncf %47 : vector<8x128xf32> to vector<8x128xbf16>
    %cst_15 = arith.constant dense<0.000000e+00> : vector<8x512xf32>
    %51 = tpu.matmul %50, %11, %cst_15 {dimension_numbers = #tpu.dot_dimension_numbers<[1], [0], [0], [1], [0, 0, 1, 1], [], []>} : vector<8x128xbf16>, vector<128x512xbf16>, vector<8x512xf32> -> vector<8x512xf32>
    %52 = arith.addf %49, %51 : vector<8x512xf32>
    %53 = vector.extract_strided_slice %52 {offsets = [0, 0], sizes = [8, 384], strides = [1, 1]} : vector<8x512xf32> to vector<8x384xf32>
    %54 = arith.negf %53 : vector<8x384xf32>
    %55 = math.exp %54 : vector<8x384xf32>
    %cst_16 = arith.constant 1.000000e+00 : f32
    %56 = vector.broadcast %cst_16 : f32 to vector<8x384xf32>
    %57 = arith.addf %56, %55 : vector<8x384xf32>
    %58 = arith.divf %56, %57 : vector<8x384xf32>
    %59 = vector.extract_strided_slice %52 {offsets = [0, 384], sizes = [8, 128], strides = [1, 1]} : vector<8x512xf32> to vector<8x128xf32>
    %60 = math.tanh %59 : vector<8x128xf32>
    %61 = vector.extract_strided_slice %58 {offsets = [0, 0], sizes = [8, 128], strides = [1, 1]} : vector<8x384xf32> to vector<8x128xf32>
    %62 = vector.extract_strided_slice %58 {offsets = [0, 128], sizes = [8, 128], strides = [1, 1]} : vector<8x384xf32> to vector<8x128xf32>
    %63 = vector.extract_strided_slice %58 {offsets = [0, 256], sizes = [8, 128], strides = [1, 1]} : vector<8x384xf32> to vector<8x128xf32>
    %64 = arith.mulf %62, %45 : vector<8x128xf32>
    %65 = arith.mulf %61, %60 : vector<8x128xf32>
    %66 = arith.addf %64, %65 : vector<8x128xf32>
    %67 = math.tanh %66 : vector<8x128xf32>
    %68 = arith.mulf %63, %67 : vector<8x128xf32>
    %69 = vector.extract_strided_slice %10 {offsets = [3, 0, 0], sizes = [1, 8, 512], strides = [1, 1, 1]} : vector<8x8x512xf32> to vector<1x8x512xf32>
    %70 = vector.shape_cast %69 : vector<1x8x512xf32> to vector<8x512xf32>
    %71 = arith.truncf %68 : vector<8x128xf32> to vector<8x128xbf16>
    %cst_17 = arith.constant dense<0.000000e+00> : vector<8x512xf32>
    %72 = tpu.matmul %71, %11, %cst_17 {dimension_numbers = #tpu.dot_dimension_numbers<[1], [0], [0], [1], [0, 0, 1, 1], [], []>} : vector<8x128xbf16>, vector<128x512xbf16>, vector<8x512xf32> -> vector<8x512xf32>
    %73 = arith.addf %70, %72 : vector<8x512xf32>
    %74 = vector.extract_strided_slice %73 {offsets = [0, 0], sizes = [8, 384], strides = [1, 1]} : vector<8x512xf32> to vector<8x384xf32>
    %75 = arith.negf %74 : vector<8x384xf32>
    %76 = math.exp %75 : vector<8x384xf32>
    %cst_18 = arith.constant 1.000000e+00 : f32
    %77 = vector.broadcast %cst_18 : f32 to vector<8x384xf32>
    %78 = arith.addf %77, %76 : vector<8x384xf32>
    %79 = arith.divf %77, %78 : vector<8x384xf32>
    %80 = vector.extract_strided_slice %73 {offsets = [0, 384], sizes = [8, 128], strides = [1, 1]} : vector<8x512xf32> to vector<8x128xf32>
    %81 = math.tanh %80 : vector<8x128xf32>
    %82 = vector.extract_strided_slice %79 {offsets = [0, 0], sizes = [8, 128], strides = [1, 1]} : vector<8x384xf32> to vector<8x128xf32>
    %83 = vector.extract_strided_slice %79 {offsets = [0, 128], sizes = [8, 128], strides = [1, 1]} : vector<8x384xf32> to vector<8x128xf32>
    %84 = vector.extract_strided_slice %79 {offsets = [0, 256], sizes = [8, 128], strides = [1, 1]} : vector<8x384xf32> to vector<8x128xf32>
    %85 = arith.mulf %83, %66 : vector<8x128xf32>
    %86 = arith.mulf %82, %81 : vector<8x128xf32>
    %87 = arith.addf %85, %86 : vector<8x128xf32>
    %88 = math.tanh %87 : vector<8x128xf32>
    %89 = arith.mulf %84, %88 : vector<8x128xf32>
    %90 = vector.extract_strided_slice %10 {offsets = [4, 0, 0], sizes = [1, 8, 512], strides = [1, 1, 1]} : vector<8x8x512xf32> to vector<1x8x512xf32>
    %91 = vector.shape_cast %90 : vector<1x8x512xf32> to vector<8x512xf32>
    %92 = arith.truncf %89 : vector<8x128xf32> to vector<8x128xbf16>
    %cst_19 = arith.constant dense<0.000000e+00> : vector<8x512xf32>
    %93 = tpu.matmul %92, %11, %cst_19 {dimension_numbers = #tpu.dot_dimension_numbers<[1], [0], [0], [1], [0, 0, 1, 1], [], []>} : vector<8x128xbf16>, vector<128x512xbf16>, vector<8x512xf32> -> vector<8x512xf32>
    %94 = arith.addf %91, %93 : vector<8x512xf32>
    %95 = vector.extract_strided_slice %94 {offsets = [0, 0], sizes = [8, 384], strides = [1, 1]} : vector<8x512xf32> to vector<8x384xf32>
    %96 = arith.negf %95 : vector<8x384xf32>
    %97 = math.exp %96 : vector<8x384xf32>
    %cst_20 = arith.constant 1.000000e+00 : f32
    %98 = vector.broadcast %cst_20 : f32 to vector<8x384xf32>
    %99 = arith.addf %98, %97 : vector<8x384xf32>
    %100 = arith.divf %98, %99 : vector<8x384xf32>
    %101 = vector.extract_strided_slice %94 {offsets = [0, 384], sizes = [8, 128], strides = [1, 1]} : vector<8x512xf32> to vector<8x128xf32>
    %102 = math.tanh %101 : vector<8x128xf32>
    %103 = vector.extract_strided_slice %100 {offsets = [0, 0], sizes = [8, 128], strides = [1, 1]} : vector<8x384xf32> to vector<8x128xf32>
    %104 = vector.extract_strided_slice %100 {offsets = [0, 128], sizes = [8, 128], strides = [1, 1]} : vector<8x384xf32> to vector<8x128xf32>
    %105 = vector.extract_strided_slice %100 {offsets = [0, 256], sizes = [8, 128], strides = [1, 1]} : vector<8x384xf32> to vector<8x128xf32>
    %106 = arith.mulf %104, %87 : vector<8x128xf32>
    %107 = arith.mulf %103, %102 : vector<8x128xf32>
    %108 = arith.addf %106, %107 : vector<8x128xf32>
    %109 = math.tanh %108 : vector<8x128xf32>
    %110 = arith.mulf %105, %109 : vector<8x128xf32>
    %111 = vector.extract_strided_slice %10 {offsets = [5, 0, 0], sizes = [1, 8, 512], strides = [1, 1, 1]} : vector<8x8x512xf32> to vector<1x8x512xf32>
    %112 = vector.shape_cast %111 : vector<1x8x512xf32> to vector<8x512xf32>
    %113 = arith.truncf %110 : vector<8x128xf32> to vector<8x128xbf16>
    %cst_21 = arith.constant dense<0.000000e+00> : vector<8x512xf32>
    %114 = tpu.matmul %113, %11, %cst_21 {dimension_numbers = #tpu.dot_dimension_numbers<[1], [0], [0], [1], [0, 0, 1, 1], [], []>} : vector<8x128xbf16>, vector<128x512xbf16>, vector<8x512xf32> -> vector<8x512xf32>
    %115 = arith.addf %112, %114 : vector<8x512xf32>
    %116 = vector.extract_strided_slice %115 {offsets = [0, 0], sizes = [8, 384], strides = [1, 1]} : vector<8x512xf32> to vector<8x384xf32>
    %117 = arith.negf %116 : vector<8x384xf32>
    %118 = math.exp %117 : vector<8x384xf32>
    %cst_22 = arith.constant 1.000000e+00 : f32
    %119 = vector.broadcast %cst_22 : f32 to vector<8x384xf32>
    %120 = arith.addf %119, %118 : vector<8x384xf32>
    %121 = arith.divf %119, %120 : vector<8x384xf32>
    %122 = vector.extract_strided_slice %115 {offsets = [0, 384], sizes = [8, 128], strides = [1, 1]} : vector<8x512xf32> to vector<8x128xf32>
    %123 = math.tanh %122 : vector<8x128xf32>
    %124 = vector.extract_strided_slice %121 {offsets = [0, 0], sizes = [8, 128], strides = [1, 1]} : vector<8x384xf32> to vector<8x128xf32>
    %125 = vector.extract_strided_slice %121 {offsets = [0, 128], sizes = [8, 128], strides = [1, 1]} : vector<8x384xf32> to vector<8x128xf32>
    %126 = vector.extract_strided_slice %121 {offsets = [0, 256], sizes = [8, 128], strides = [1, 1]} : vector<8x384xf32> to vector<8x128xf32>
    %127 = arith.mulf %125, %108 : vector<8x128xf32>
    %128 = arith.mulf %124, %123 : vector<8x128xf32>
    %129 = arith.addf %127, %128 : vector<8x128xf32>
    %130 = math.tanh %129 : vector<8x128xf32>
    %131 = arith.mulf %126, %130 : vector<8x128xf32>
    %132 = vector.extract_strided_slice %10 {offsets = [6, 0, 0], sizes = [1, 8, 512], strides = [1, 1, 1]} : vector<8x8x512xf32> to vector<1x8x512xf32>
    %133 = vector.shape_cast %132 : vector<1x8x512xf32> to vector<8x512xf32>
    %134 = arith.truncf %131 : vector<8x128xf32> to vector<8x128xbf16>
    %cst_23 = arith.constant dense<0.000000e+00> : vector<8x512xf32>
    %135 = tpu.matmul %134, %11, %cst_23 {dimension_numbers = #tpu.dot_dimension_numbers<[1], [0], [0], [1], [0, 0, 1, 1], [], []>} : vector<8x128xbf16>, vector<128x512xbf16>, vector<8x512xf32> -> vector<8x512xf32>
    %136 = arith.addf %133, %135 : vector<8x512xf32>
    %137 = vector.extract_strided_slice %136 {offsets = [0, 0], sizes = [8, 384], strides = [1, 1]} : vector<8x512xf32> to vector<8x384xf32>
    %138 = arith.negf %137 : vector<8x384xf32>
    %139 = math.exp %138 : vector<8x384xf32>
    %cst_24 = arith.constant 1.000000e+00 : f32
    %140 = vector.broadcast %cst_24 : f32 to vector<8x384xf32>
    %141 = arith.addf %140, %139 : vector<8x384xf32>
    %142 = arith.divf %140, %141 : vector<8x384xf32>
    %143 = vector.extract_strided_slice %136 {offsets = [0, 384], sizes = [8, 128], strides = [1, 1]} : vector<8x512xf32> to vector<8x128xf32>
    %144 = math.tanh %143 : vector<8x128xf32>
    %145 = vector.extract_strided_slice %142 {offsets = [0, 0], sizes = [8, 128], strides = [1, 1]} : vector<8x384xf32> to vector<8x128xf32>
    %146 = vector.extract_strided_slice %142 {offsets = [0, 128], sizes = [8, 128], strides = [1, 1]} : vector<8x384xf32> to vector<8x128xf32>
    %147 = vector.extract_strided_slice %142 {offsets = [0, 256], sizes = [8, 128], strides = [1, 1]} : vector<8x384xf32> to vector<8x128xf32>
    %148 = arith.mulf %146, %129 : vector<8x128xf32>
    %149 = arith.mulf %145, %144 : vector<8x128xf32>
    %150 = arith.addf %148, %149 : vector<8x128xf32>
    %151 = math.tanh %150 : vector<8x128xf32>
    %152 = arith.mulf %147, %151 : vector<8x128xf32>
    %153 = vector.extract_strided_slice %10 {offsets = [7, 0, 0], sizes = [1, 8, 512], strides = [1, 1, 1]} : vector<8x8x512xf32> to vector<1x8x512xf32>
    %154 = vector.shape_cast %153 : vector<1x8x512xf32> to vector<8x512xf32>
    %155 = arith.truncf %152 : vector<8x128xf32> to vector<8x128xbf16>
    %cst_25 = arith.constant dense<0.000000e+00> : vector<8x512xf32>
    %156 = tpu.matmul %155, %11, %cst_25 {dimension_numbers = #tpu.dot_dimension_numbers<[1], [0], [0], [1], [0, 0, 1, 1], [], []>} : vector<8x128xbf16>, vector<128x512xbf16>, vector<8x512xf32> -> vector<8x512xf32>
    %157 = arith.addf %154, %156 : vector<8x512xf32>
    %158 = vector.extract_strided_slice %157 {offsets = [0, 0], sizes = [8, 384], strides = [1, 1]} : vector<8x512xf32> to vector<8x384xf32>
    %159 = arith.negf %158 : vector<8x384xf32>
    %160 = math.exp %159 : vector<8x384xf32>
    %cst_26 = arith.constant 1.000000e+00 : f32
    %161 = vector.broadcast %cst_26 : f32 to vector<8x384xf32>
    %162 = arith.addf %161, %160 : vector<8x384xf32>
    %163 = arith.divf %161, %162 : vector<8x384xf32>
    %164 = vector.extract_strided_slice %157 {offsets = [0, 384], sizes = [8, 128], strides = [1, 1]} : vector<8x512xf32> to vector<8x128xf32>
    %165 = math.tanh %164 : vector<8x128xf32>
    %166 = vector.extract_strided_slice %163 {offsets = [0, 0], sizes = [8, 128], strides = [1, 1]} : vector<8x384xf32> to vector<8x128xf32>
    %167 = vector.extract_strided_slice %163 {offsets = [0, 128], sizes = [8, 128], strides = [1, 1]} : vector<8x384xf32> to vector<8x128xf32>
    %168 = vector.extract_strided_slice %163 {offsets = [0, 256], sizes = [8, 128], strides = [1, 1]} : vector<8x384xf32> to vector<8x128xf32>
    %169 = arith.mulf %167, %150 : vector<8x128xf32>
    %170 = arith.mulf %166, %165 : vector<8x128xf32>
    %171 = arith.addf %169, %170 : vector<8x128xf32>
    %172 = math.tanh %171 : vector<8x128xf32>
    %173 = arith.mulf %168, %172 : vector<8x128xf32>
    %c0_27 = arith.constant 0 : index
    %c0_28 = arith.constant 0 : index
    %174 = vector.load %arg6[%c0_27, %c0_28] : memref<128x64xf32, #tpu.memory_space<vmem>>, vector<128x64xf32>
    %cst_29 = arith.constant dense<0.000000e+00> : vector<8x64xf32>
    %175 = tpu.matmul %173, %174, %cst_29 {dimension_numbers = #tpu.dot_dimension_numbers<[1], [0], [0], [1], [0, 0, 1, 1], [], []>} : vector<8x128xf32>, vector<128x64xf32>, vector<8x64xf32> -> vector<8x64xf32>
    %c0_30 = arith.constant 0 : index
    %c0_31 = arith.constant 0 : index
    %176 = vector.load %arg7[%c0_30, %c0_31] : memref<1x64xf32, #tpu.memory_space<vmem>>, vector<1x64xf32>
    %177 = vector.broadcast %176 : vector<1x64xf32> to vector<8x64xf32>
    %178 = arith.addf %175, %177 : vector<8x64xf32>
    %c0_32 = arith.constant 0 : index
    %c0_33 = arith.constant 0 : index
    %179 = vector.load %arg8[%c0_32, %c0_33] : memref<64x64xf32, #tpu.memory_space<vmem>>, vector<64x64xf32>
    %cst_34 = arith.constant dense<0.000000e+00> : vector<8x64xf32>
    %180 = tpu.matmul %178, %179, %cst_34 {dimension_numbers = #tpu.dot_dimension_numbers<[1], [0], [0], [1], [0, 0, 1, 1], [], []>} : vector<8x64xf32>, vector<64x64xf32>, vector<8x64xf32> -> vector<8x64xf32>
    %c0_35 = arith.constant 0 : index
    %c0_36 = arith.constant 0 : index
    %181 = vector.load %arg9[%c0_35, %c0_36] : memref<1x64xf32, #tpu.memory_space<vmem>>, vector<1x64xf32>
    %182 = vector.broadcast %181 : vector<1x64xf32> to vector<8x64xf32>
    %183 = arith.addf %180, %182 : vector<8x64xf32>
    %184 = arith.negf %183 : vector<8x64xf32>
    %185 = math.exp %184 : vector<8x64xf32>
    %cst_37 = arith.constant 1.000000e+00 : f32
    %186 = vector.broadcast %cst_37 : f32 to vector<8x64xf32>
    %187 = arith.addf %186, %185 : vector<8x64xf32>
    %188 = arith.divf %186, %187 : vector<8x64xf32>
    %189 = arith.mulf %178, %188 : vector<8x64xf32>
    %c0_38 = arith.constant 0 : index
    %c0_39 = arith.constant 0 : index
    %190 = vector.load %arg10[%c0_38, %c0_39] : memref<64x32xf32, #tpu.memory_space<vmem>>, vector<64x32xf32>
    %cst_40 = arith.constant dense<0.000000e+00> : vector<8x32xf32>
    %191 = tpu.matmul %189, %190, %cst_40 {dimension_numbers = #tpu.dot_dimension_numbers<[1], [0], [0], [1], [0, 0, 1, 1], [], []>} : vector<8x64xf32>, vector<64x32xf32>, vector<8x32xf32> -> vector<8x32xf32>
    %c0_41 = arith.constant 0 : index
    %c0_42 = arith.constant 0 : index
    %192 = vector.load %arg11[%c0_41, %c0_42] : memref<1x32xf32, #tpu.memory_space<vmem>>, vector<1x32xf32>
    %193 = vector.broadcast %192 : vector<1x32xf32> to vector<8x32xf32>
    %194 = arith.addf %191, %193 : vector<8x32xf32>
    %cst_43 = arith.constant 0.000000e+00 : f32
    %195 = vector.broadcast %cst_43 : f32 to vector<8x32xf32>
    %196 = arith.maximumf %194, %195 : vector<8x32xf32>
    %c0_44 = arith.constant 0 : index
    %c0_45 = arith.constant 0 : index
    %197 = vector.load %arg12[%c0_44, %c0_45] : memref<32x32xf32, #tpu.memory_space<vmem>>, vector<32x32xf32>
    %cst_46 = arith.constant dense<0.000000e+00> : vector<8x32xf32>
    %198 = tpu.matmul %196, %197, %cst_46 {dimension_numbers = #tpu.dot_dimension_numbers<[1], [0], [0], [1], [0, 0, 1, 1], [], []>} : vector<8x32xf32>, vector<32x32xf32>, vector<8x32xf32> -> vector<8x32xf32>
    %c0_47 = arith.constant 0 : index
    %c0_48 = arith.constant 0 : index
    %199 = vector.load %arg13[%c0_47, %c0_48] : memref<1x32xf32, #tpu.memory_space<vmem>>, vector<1x32xf32>
    %200 = vector.broadcast %199 : vector<1x32xf32> to vector<8x32xf32>
    %201 = arith.addf %198, %200 : vector<8x32xf32>
    %cst_49 = arith.constant 0.000000e+00 : f32
    %202 = vector.broadcast %cst_49 : f32 to vector<8x32xf32>
    %203 = arith.maximumf %201, %202 : vector<8x32xf32>
    %c0_50 = arith.constant 0 : index
    %c0_51 = arith.constant 0 : index
    %204 = vector.load %arg14[%c0_50, %c0_51] : memref<32x32xf32, #tpu.memory_space<vmem>>, vector<32x32xf32>
    %cst_52 = arith.constant dense<0.000000e+00> : vector<8x32xf32>
    %205 = tpu.matmul %203, %204, %cst_52 {dimension_numbers = #tpu.dot_dimension_numbers<[1], [0], [0], [1], [0, 0, 1, 1], [], []>} : vector<8x32xf32>, vector<32x32xf32>, vector<8x32xf32> -> vector<8x32xf32>
    %c0_53 = arith.constant 0 : index
    %c0_54 = arith.constant 0 : index
    %206 = vector.load %arg15[%c0_53, %c0_54] : memref<1x32xf32, #tpu.memory_space<vmem>>, vector<1x32xf32>
    %207 = vector.broadcast %206 : vector<1x32xf32> to vector<8x32xf32>
    %208 = arith.addf %205, %207 : vector<8x32xf32>
    %cst_55 = arith.constant 0.000000e+00 : f32
    %209 = vector.broadcast %cst_55 : f32 to vector<8x32xf32>
    %210 = arith.maximumf %208, %209 : vector<8x32xf32>
    %c0_56 = arith.constant 0 : index
    %c0_57 = arith.constant 0 : index
    %211 = vector.load %arg16[%c0_56, %c0_57] : memref<32x2xf32, #tpu.memory_space<vmem>>, vector<32x2xf32>
    %cst_58 = arith.constant dense<0.000000e+00> : vector<8x2xf32>
    %212 = tpu.matmul %210, %211, %cst_58 {dimension_numbers = #tpu.dot_dimension_numbers<[1], [0], [0], [1], [0, 0, 1, 1], [], []>} : vector<8x32xf32>, vector<32x2xf32>, vector<8x2xf32> -> vector<8x2xf32>
    %c0_59 = arith.constant 0 : index
    %c0_60 = arith.constant 0 : index
    %213 = vector.load %arg17[%c0_59, %c0_60] : memref<1x2xf32, #tpu.memory_space<vmem>>, vector<1x2xf32>
    %214 = vector.broadcast %213 : vector<1x2xf32> to vector<8x2xf32>
    %215 = arith.addf %212, %214 : vector<8x2xf32>
    %216 = vector.extract_strided_slice %178 {offsets = [0, 0], sizes = [8, 32], strides = [1, 1]} : vector<8x64xf32> to vector<8x32xf32>
    %217 = vector.extract_strided_slice %215 {offsets = [0, 0], sizes = [8, 1], strides = [1, 1]} : vector<8x2xf32> to vector<8x1xf32>
    %218 = vector.broadcast %217 : vector<8x1xf32> to vector<8x32xf32>
    %219 = arith.mulf %216, %218 : vector<8x32xf32>
    %220 = vector.extract_strided_slice %178 {offsets = [0, 32], sizes = [8, 32], strides = [1, 1]} : vector<8x64xf32> to vector<8x32xf32>
    %221 = vector.extract_strided_slice %215 {offsets = [0, 1], sizes = [8, 1], strides = [1, 1]} : vector<8x2xf32> to vector<8x1xf32>
    %222 = vector.broadcast %221 : vector<8x1xf32> to vector<8x32xf32>
    %223 = arith.mulf %220, %222 : vector<8x32xf32>
    %224 = arith.addf %219, %223 : vector<8x32xf32>
    %c0_61 = arith.constant 0 : index
    %c0_62 = arith.constant 0 : index
    %225 = vector.load %arg18[%c0_61, %c0_62] : memref<32x128xf32, #tpu.memory_space<vmem>>, vector<32x128xf32>
    %cst_63 = arith.constant dense<0.000000e+00> : vector<8x128xf32>
    %226 = tpu.matmul %224, %225, %cst_63 {dimension_numbers = #tpu.dot_dimension_numbers<[1], [0], [0], [1], [0, 0, 1, 1], [], []>} : vector<8x32xf32>, vector<32x128xf32>, vector<8x128xf32> -> vector<8x128xf32>
    %c0_64 = arith.constant 0 : index
    %c0_65 = arith.constant 0 : index
    %227 = vector.load %arg19[%c0_64, %c0_65] : memref<1x128xf32, #tpu.memory_space<vmem>>, vector<1x128xf32>
    %228 = vector.broadcast %227 : vector<1x128xf32> to vector<8x128xf32>
    %229 = arith.addf %226, %228 : vector<8x128xf32>
    %c0_66 = arith.constant 0 : index
    %c0_67 = arith.constant 0 : index
    %230 = vector.load %arg20[%c0_66, %c0_67] : memref<8x128xf32, #tpu.memory_space<vmem>>, vector<8x128xf32>
    tpu.vector_store %arg20[%c0_66, %c0_67], %229 {strides = array<i32>} : memref<8x128xf32, #tpu.memory_space<vmem>>, vector<8x128xf32>,
    return
  }
}

</mosaic_0001>

<llo_original>
// kernel: attention_forward.1
$region0: #{attention_forward.1}
  #allocation0 [shape = 'u32[]', space=smem, size = 0x4, offset = 0x4, fixed_abs, tag = 'smem constant byte address 0x4 - core index']
  #allocation1 [shape = 'u32[144,128]{1,0:T(1,128)}', space=vmem, size = 0x12000, scoped, tag = 'internal scratch']
  %s0 = inlined_call_operand.vmem [shape: f32[64,32], index: 0, kind: input, shape index: {}]
  %s1 = inlined_call_operand.vmem [shape: f32[64,16], index: 1, kind: input, shape index: {}]
  %s2 = inlined_call_operand.vmem [shape: f32[32,512], index: 2, kind: input, shape index: {}]
  %s3 = inlined_call_operand.vmem [shape: f32[16,512], index: 3, kind: input, shape index: {}]
  %s4 = inlined_call_operand.hbm [shape: f32[1,512], index: 4, kind: input, shape index: {}]
  %s5 = inlined_call_operand.vmem [shape: bf16[128,512], index: 5, kind: input, shape index: {}]
  %s6 = inlined_call_operand.vmem [shape: f32[128,64], index: 6, kind: input, shape index: {}]
  %s7 = inlined_call_operand.hbm [shape: f32[1,64], index: 7, kind: input, shape index: {}]
  %s8 = inlined_call_operand.vmem [shape: f32[64,64], index: 8, kind: input, shape index: {}]
  %s9 = inlined_call_operand.vmem [shape: f32[1,64], index: 9, kind: input, shape index: {}]
  %s10 = inlined_call_operand.vmem [shape: f32[64,32], index: 10, kind: input, shape index: {}]
  %s11 = inlined_call_operand.hbm [shape: f32[1,32], index: 11, kind: input, shape index: {}]
  %s12 = inlined_call_operand.hbm [shape: f32[32,32], index: 12, kind: input, shape index: {}]
  %s13 = inlined_call_operand.hbm [shape: f32[1,32], index: 13, kind: input, shape index: {}]
  %s14 = inlined_call_operand.hbm [shape: f32[32,32], index: 14, kind: input, shape index: {}]
  %s15 = inlined_call_operand.hbm [shape: f32[1,32], index: 15, kind: input, shape index: {}]
  %s16 = inlined_call_operand.vmem [shape: f32[32,2], index: 16, kind: input, shape index: {}]
  %s17 = inlined_call_operand.hbm [shape: f32[1,2], index: 17, kind: input, shape index: {}]
  %s18 = inlined_call_operand.vmem [shape: f32[32,128], index: 18, kind: input, shape index: {}]
  %s19 = inlined_call_operand.vmem [shape: f32[1,128], index: 19, kind: input, shape index: {}]
  %s20 = inlined_call_operand.vmem [shape: f32[8,128], index: 20, kind: output, shape index: {}]
  %s21 = sld [smem:[#allocation0]]
  $region122: #{attention_forward.1} parent=0
    _
  %s23 = ssub.s32 1, %s21
  %s24 = scalar_select 0, %s23, %s21
  $region1: #{attention_forward.1} parent=0
    #allocation2 [shape = 'u8[2048]{0}', space=vmem, size = 0x800, scoped, tag = 'input window, operand 4, single buffered']
    #allocation3 [shape = 's32[1]{0}', space=sflag, size = 0x4, scoped, tag = 'scoped memory for attention_forward.1']
    #allocation4 [shape = 'u8[512]{0}', space=vmem, size = 0x400, scoped, tag = 'input window, operand 7, single buffered']
    #allocation5 [shape = 's32[1]{0}', space=sflag, size = 0x4, scoped, tag = 'scoped memory for attention_forward.1']
    #allocation6 [shape = 'u8[512]{0}', space=vmem, size = 0x400, scoped, tag = 'input window, operand 11, single buffered']
    #allocation7 [shape = 'u8[16384]{0}', space=vmem, size = 0x4000, scoped, tag = 'input window, operand 12, single buffered']
    #allocation8 [shape = 's32[1]{0}', space=sflag, size = 0x4, scoped, tag = 'scoped memory for attention_forward.1']
    #allocation9 [shape = 'u8[512]{0}', space=vmem, size = 0x400, scoped, tag = 'input window, operand 13, single buffered']
    #allocation10 [shape = 'u8[16384]{0}', space=vmem, size = 0x4000, scoped, tag = 'input window, operand 14, single buffered']
    #allocation11 [shape = 's32[1]{0}', space=sflag, size = 0x4, scoped, tag = 'scoped memory for attention_forward.1']
    #allocation12 [shape = 'u8[512]{0}', space=vmem, size = 0x400, scoped, tag = 'input window, operand 15, single buffered']
    #allocation13 [shape = 'u8[512]{0}', space=vmem, size = 0x400, scoped, tag = 'input window, operand 17, single buffered']
    #allocation14 [shape = 's32[1]{0}', space=sflag, size = 0x4, scoped, tag = 'scoped memory for attention_forward.1']
    %25 = vsyncpa [#allocation3], 0
    %26 = vsyncpa [#allocation5], 0
    %27 = vsyncpa [#allocation8], 0
    %28 = vsyncpa [#allocation11], 0
    %29 = vsyncpa [#allocation14], 0
    // Predicated region
    $region2: #{attention_forward.1} parent=1 // pred_check
      _
    $region3: #{attention_forward.1} parent=1 // pred_check_branch
      %31 = sbr.rel (0) target = $region5
    $region4: #{attention_forward.1} parent=1 // pred_region
      _
    $region5: #{attention_forward.1} parent=1 // pred_fallthru
      _
    // Predicated region
    $region6: #{attention_forward.1} parent=1 // pred_check
      _
    $region7: #{attention_forward.1} parent=1 // pred_check_branch
      %33 = sbr.rel (0) target = $region9
    $region8: #{attention_forward.1} parent=1 // pred_region
      _
    $region9: #{attention_forward.1} parent=1 // pred_fallthru
      _
    // Predicated region
    $region10: #{attention_forward.1} parent=1 // pred_check
      _
    $region11: #{attention_forward.1} parent=1 // pred_check_branch
      %35 = sbr.rel (0) target = $region13
    $region12: #{attention_forward.1} parent=1 // pred_region
      _
    $region13: #{attention_forward.1} parent=1 // pred_fallthru
      _
    // Predicated region
    $region14: #{attention_forward.1} parent=1 // pred_check
      _
    $region15: #{attention_forward.1} parent=1 // pred_check_branch
      %37 = sbr.rel (0) target = $region17
    $region16: #{attention_forward.1} parent=1 // pred_region
      _
    $region17: #{attention_forward.1} parent=1 // pred_fallthru
      _
    // Predicated region
    $region18: #{attention_forward.1} parent=1 // pred_check
      _
    $region19: #{attention_forward.1} parent=1 // pred_check_branch
      %39 = sbr.rel (0) target = $region21
    $region20: #{attention_forward.1} parent=1 // pred_region
      %s41 = ssub.s32 64, 64
      %42 = vsyncadd [#allocation3], %s41
      %s44 = sshll.u32 [#allocation2], 4
      %s45 = int_to_ptr.vmem [resolvable:$true] %s44
      %47 = dma.hbm_to_vmem [thread:$0]  %s4, 64, %s45, [#allocation3]
    $region21: #{attention_forward.1} parent=1 // pred_fallthru
      _
    // Predicated region
    $region22: #{attention_forward.1} parent=1 // pred_check
      _
    $region23: #{attention_forward.1} parent=1 // pred_check_branch
      %49 = sbr.rel (0) target = $region25
    $region24: #{attention_forward.1} parent=1 // pred_region
      _
    $region25: #{attention_forward.1} parent=1 // pred_fallthru
      _
    // Predicated region
    $region26: #{attention_forward.1} parent=1 // pred_check
      _
    $region27: #{attention_forward.1} parent=1 // pred_check_branch
      %51 = sbr.rel (0) target = $region29
    $region28: #{attention_forward.1} parent=1 // pred_region
      _
    $region29: #{attention_forward.1} parent=1 // pred_fallthru
      _
    // Predicated region
    $region30: #{attention_forward.1} parent=1 // pred_check
      _
    $region31: #{attention_forward.1} parent=1 // pred_check_branch
      %53 = sbr.rel (0) target = $region33
    $region32: #{attention_forward.1} parent=1 // pred_region
      %s55 = ssub.s32 16, 16
      %56 = vsyncadd [#allocation5], %s55
      %s58 = sshll.u32 [#allocation4], 4
      %s59 = int_to_ptr.vmem [resolvable:$true] %s58
      %61 = dma.hbm_to_vmem [thread:$0]  %s7, 16, %s59, [#allocation5]
    $region33: #{attention_forward.1} parent=1 // pred_fallthru
      _
    // Predicated region
    $region34: #{attention_forward.1} parent=1 // pred_check
      _
    $region35: #{attention_forward.1} parent=1 // pred_check_branch
      %63 = sbr.rel (0) target = $region37
    $region36: #{attention_forward.1} parent=1 // pred_region
      _
    $region37: #{attention_forward.1} parent=1 // pred_fallthru
      _
    // Predicated region
    $region38: #{attention_forward.1} parent=1 // pred_check
      _
    $region39: #{attention_forward.1} parent=1 // pred_check_branch
      %65 = sbr.rel (0) target = $region41
    $region40: #{attention_forward.1} parent=1 // pred_region
      _
    $region41: #{attention_forward.1} parent=1 // pred_fallthru
      _
    // Predicated region
    $region42: #{attention_forward.1} parent=1 // pred_check
      _
    $region43: #{attention_forward.1} parent=1 // pred_check_branch
      %67 = sbr.rel (0) target = $region45
    $region44: #{attention_forward.1} parent=1 // pred_region
      _
    $region45: #{attention_forward.1} parent=1 // pred_fallthru
      _
    // Predicated region
    $region46: #{attention_forward.1} parent=1 // pred_check
      _
    $region47: #{attention_forward.1} parent=1 // pred_check_branch
      %69 = sbr.rel (0) target = $region49
    $region48: #{attention_forward.1} parent=1 // pred_region
      %s71 = ssub.s32 16, 16
      %72 = vsyncadd [#allocation5], %s71
      %s74 = sshll.u32 [#allocation6], 4
      %s75 = int_to_ptr.vmem [resolvable:$true] %s74
      %77 = dma.hbm_to_vmem [thread:$0]  %s11, 16, %s75, [#allocation5]
    $region49: #{attention_forward.1} parent=1 // pred_fallthru
      _
    // Predicated region
    $region50: #{attention_forward.1} parent=1 // pred_check
      _
    $region51: #{attention_forward.1} parent=1 // pred_check_branch
      %79 = sbr.rel (0) target = $region53
    $region52: #{attention_forward.1} parent=1 // pred_region
      %s81 = ssub.s32 512, 512
      %82 = vsyncadd [#allocation8], %s81
      %s83 = sshll.u32 [#allocation7], 4
      %s84 = int_to_ptr.vmem [resolvable:$true] %s83
      %89 = dma.hbm_to_vmem [thread:$0]  %s12, 512, %s84, [#allocation8], 128, 128, 8
    $region53: #{attention_forward.1} parent=1 // pred_fallthru
      _
    // Predicated region
    $region54: #{attention_forward.1} parent=1 // pred_check
      _
    $region55: #{attention_forward.1} parent=1 // pred_check_branch
      %91 = sbr.rel (0) target = $region57
    $region56: #{attention_forward.1} parent=1 // pred_region
      %s93 = ssub.s32 16, 16
      %94 = vsyncadd [#allocation8], %s93
      %s96 = sshll.u32 [#allocation9], 4
      %s97 = int_to_ptr.vmem [resolvable:$true] %s96
      %99 = dma.hbm_to_vmem [thread:$0]  %s13, 16, %s97, [#allocation8]
    $region57: #{attention_forward.1} parent=1 // pred_fallthru
      _
    // Predicated region
    $region58: #{attention_forward.1} parent=1 // pred_check
      _
    $region59: #{attention_forward.1} parent=1 // pred_check_branch
      %101 = sbr.rel (0) target = $region61
    $region60: #{attention_forward.1} parent=1 // pred_region
      %s103 = ssub.s32 512, 512
      %104 = vsyncadd [#allocation11], %s103
      %s105 = sshll.u32 [#allocation10], 4
      %s106 = int_to_ptr.vmem [resolvable:$true] %s105
      %111 = dma.hbm_to_vmem [thread:$0]  %s14, 512, %s106, [#allocation11], 128, 128, 8
    $region61: #{attention_forward.1} parent=1 // pred_fallthru
      _
    // Predicated region
    $region62: #{attention_forward.1} parent=1 // pred_check
      _
    $region63: #{attention_forward.1} parent=1 // pred_check_branch
      %113 = sbr.rel (0) target = $region65
    $region64: #{attention_forward.1} parent=1 // pred_region
      %s115 = ssub.s32 16, 16
      %116 = vsyncadd [#allocation11], %s115
      %s118 = sshll.u32 [#allocation12], 4
      %s119 = int_to_ptr.vmem [resolvable:$true] %s118
      %121 = dma.hbm_to_vmem [thread:$0]  %s15, 16, %s119, [#allocation11]
    $region65: #{attention_forward.1} parent=1 // pred_fallthru
      _
    // Predicated region
    $region66: #{attention_forward.1} parent=1 // pred_check
      _
    $region67: #{attention_forward.1} parent=1 // pred_check_branch
      %123 = sbr.rel (0) target = $region69
    $region68: #{attention_forward.1} parent=1 // pred_region
      _
    $region69: #{attention_forward.1} parent=1 // pred_fallthru
      _
    // Predicated region
    $region70: #{attention_forward.1} parent=1 // pred_check
      _
    $region71: #{attention_forward.1} parent=1 // pred_check_branch
      %125 = sbr.rel (0) target = $region73
    $region72: #{attention_forward.1} parent=1 // pred_region
      %s127 = ssub.s32 16, 16
      %128 = vsyncadd [#allocation14], %s127
      %s130 = sshll.u32 [#allocation13], 4
      %s131 = int_to_ptr.vmem [resolvable:$true] %s130
      %133 = dma.hbm_to_vmem [thread:$0]  %s17, 16, %s131, [#allocation14]
    $region73: #{attention_forward.1} parent=1 // pred_fallthru
      _
    // Predicated region
    $region74: #{attention_forward.1} parent=1 // pred_check
      _
    $region75: #{attention_forward.1} parent=1 // pred_check_branch
      %135 = sbr.rel (0) target = $region77
    $region76: #{attention_forward.1} parent=1 // pred_region
      _
    $region77: #{attention_forward.1} parent=1 // pred_fallthru
      _
    // Predicated region
    $region78: #{attention_forward.1} parent=1 // pred_check
      _
    $region79: #{attention_forward.1} parent=1 // pred_check_branch
      %137 = sbr.rel (0) target = $region81
    $region80: #{attention_forward.1} parent=1 // pred_region
      _
    $region81: #{attention_forward.1} parent=1 // pred_fallthru
      _
    // Predicated region
    $region82: #{attention_forward.1} parent=1 // pred_check
      _
    $region83: #{attention_forward.1} parent=1 // pred_check_branch
      %139 = sbr.rel (0) target = $region85
    $region84: #{attention_forward.1} parent=1 // pred_region
      %140 = dma.done [#allocation3], 64
    $region85: #{attention_forward.1} parent=1 // pred_fallthru
      _
    // Predicated region
    $region86: #{attention_forward.1} parent=1 // pred_check
      _
    $region87: #{attention_forward.1} parent=1 // pred_check_branch
      %142 = sbr.rel (0) target = $region89
    $region88: #{attention_forward.1} parent=1 // pred_region
      %143 = dma.done [#allocation5], 16
    $region89: #{attention_forward.1} parent=1 // pred_fallthru
      _
    // Predicated region
    $region90: #{attention_forward.1} parent=1 // pred_check
      _
    $region91: #{attention_forward.1} parent=1 // pred_check_branch
      %145 = sbr.rel (0) target = $region93
    $region92: #{attention_forward.1} parent=1 // pred_region
      %146 = dma.done [#allocation5], 16
    $region93: #{attention_forward.1} parent=1 // pred_fallthru
      _
    // Predicated region
    $region94: #{attention_forward.1} parent=1 // pred_check
      _
    $region95: #{attention_forward.1} parent=1 // pred_check_branch
      %148 = sbr.rel (0) target = $region97
    $region96: #{attention_forward.1} parent=1 // pred_region
      %149 = dma.done [#allocation8], 512
    $region97: #{attention_forward.1} parent=1 // pred_fallthru
      _
    // Predicated region
    $region98: #{attention_forward.1} parent=1 // pred_check
      _
    $region99: #{attention_forward.1} parent=1 // pred_check_branch
      %151 = sbr.rel (0) target = $region101
    $region100: #{attention_forward.1} parent=1 // pred_region
      %152 = dma.done [#allocation8], 16
    $region101: #{attention_forward.1} parent=1 // pred_fallthru
      _
    // Predicated region
    $region102: #{attention_forward.1} parent=1 // pred_check
      _
    $region103: #{attention_forward.1} parent=1 // pred_check_branch
      %154 = sbr.rel (0) target = $region105
    $region104: #{attention_forward.1} parent=1 // pred_region
      %155 = dma.done [#allocation11], 512
    $region105: #{attention_forward.1} parent=1 // pred_fallthru
      _
    // Predicated region
    $region106: #{attention_forward.1} parent=1 // pred_check
      _
    $region107: #{attention_forward.1} parent=1 // pred_check_branch
      %157 = sbr.rel (0) target = $region109
    $region108: #{attention_forward.1} parent=1 // pred_region
      %158 = dma.done [#allocation11], 16
    $region109: #{attention_forward.1} parent=1 // pred_fallthru
      _
    // Predicated region
    $region110: #{attention_forward.1} parent=1 // pred_check
      _
    $region111: #{attention_forward.1} parent=1 // pred_check_branch
      %160 = sbr.rel (0) target = $region113
    $region112: #{attention_forward.1} parent=1 // pred_region
      %161 = dma.done [#allocation14], 16
    $region113: #{attention_forward.1} parent=1 // pred_fallthru
      _
    %v163 = vld [vmem:[%s0] sm:$0xff]
    %v164 = vld [vmem:[%s0 + $0x8] sm:$0xff]
    %v165 = vld [vmem:[%s0 + $0x10] sm:$0xff]
    %v166 = vld [vmem:[%s0 + $0x18] sm:$0xff]
    %v167 = vld [vmem:[%s0 + $0x20] sm:$0xff]
    %v168 = vld [vmem:[%s0 + $0x28] sm:$0xff]
    %v169 = vld [vmem:[%s0 + $0x30] sm:$0xff]
    %v170 = vld [vmem:[%s0 + $0x38] sm:$0xff]
    %v171 = vld [vmem:[%s2] sm:$0xff]
    %v172 = vld [vmem:[%s2 + $0x8] sm:$0xff]
    %v173 = vld [vmem:[%s2 + $0x10] sm:$0xff]
    %v174 = vld [vmem:[%s2 + $0x18] sm:$0xff]
    %v175 = vld [vmem:[%s2 + $0x20] sm:$0xff]
    %v176 = vld [vmem:[%s2 + $0x28] sm:$0xff]
    %v177 = vld [vmem:[%s2 + $0x30] sm:$0xff]
    %v178 = vld [vmem:[%s2 + $0x38] sm:$0xff]
    %v179 = vld [vmem:[%s2 + $0x40] sm:$0xff]
    %v180 = vld [vmem:[%s2 + $0x48] sm:$0xff]
    %v181 = vld [vmem:[%s2 + $0x50] sm:$0xff]
    %v182 = vld [vmem:[%s2 + $0x58] sm:$0xff]
    %v183 = vld [vmem:[%s2 + $0x60] sm:$0xff]
    %v184 = vld [vmem:[%s2 + $0x68] sm:$0xff]
    %v185 = vld [vmem:[%s2 + $0x70] sm:$0xff]
    %v186 = vld [vmem:[%s2 + $0x78] sm:$0xff]
    %v187 = vld [vmem:[%s1] sm:$0xff]
    %v188 = vld [vmem:[%s1 + $0x8] sm:$0xff]
    %v189 = vld [vmem:[%s1 + $0x10] sm:$0xff]
    %v190 = vld [vmem:[%s1 + $0x18] sm:$0xff]
    %v191 = vld [vmem:[%s1 + $0x20] sm:$0xff]
    %v192 = vld [vmem:[%s1 + $0x28] sm:$0xff]
    %v193 = vld [vmem:[%s1 + $0x30] sm:$0xff]
    %v194 = vld [vmem:[%s1 + $0x38] sm:$0xff]
    %v195 = vld [vmem:[%s3] sm:$0xff]
    %v196 = vld [vmem:[%s3 + $0x8] sm:$0xff]
    %v197 = vld [vmem:[%s3 + $0x10] sm:$0xff]
    %v198 = vld [vmem:[%s3 + $0x18] sm:$0xff]
    %v199 = vld [vmem:[%s3 + $0x20] sm:$0xff]
    %v200 = vld [vmem:[%s3 + $0x28] sm:$0xff]
    %v201 = vld [vmem:[%s3 + $0x30] sm:$0xff]
    %v202 = vld [vmem:[%s3 + $0x38] sm:$0xff]
    %vm203 = vcmask 130048
    %v205 = vsel %vm203, %v187, 0
    %v208 = vsel %vm203, %v188, 0
    %v211 = vsel %vm203, %v189, 0
    %v214 = vsel %vm203, %v190, 0
    %v217 = vsel %vm203, %v191, 0
    %v220 = vsel %vm203, %v192, 0
    %v223 = vsel %vm203, %v193, 0
    %v226 = vsel %vm203, %v194, 0
    %228 = vmatprep.subr.mxu0 %v196
    %229 = vmatpush1.msra.mxu0 %v195
    %230 = vmatprep.subr.mxu0 %v200
    %231 = vmatpush1.msra.mxu0 %v199
    %232 = vmatprep.subr.mxu0 0.0
    %233 = vmatpush1.msra.mxu0 0.0
    %234 = vmatprep.subr.mxu0 0.0
    %235 = vmatpush1.msra.mxu0 0.0
    %236 = vmatprep.subr.mxu0 0.0
    %237 = vmatpush1.msra.mxu0 0.0
    %238 = vmatprep.subr.mxu0 0.0
    %239 = vmatpush1.msra.mxu0 0.0
    %240 = vmatprep.subr.mxu0 0.0
    %241 = vmatpush1.msra.mxu0 0.0
    %242 = vmatprep.subr.mxu0 0.0
    %243 = vmatpush1.msra.mxu0 0.0
    %244 = vmatprep.subr.mxu0 0.0
    %245 = vmatpush1.msra.mxu0 0.0
    %246 = vmatprep.subr.mxu0 0.0
    %247 = vmatpush1.msra.mxu0 0.0
    %248 = vmatprep.subr.mxu0 0.0
    %249 = vmatpush1.msra.mxu0 0.0
    %250 = vmatprep.subr.mxu0 0.0
    %251 = vmatpush1.msra.mxu0 0.0
    %252 = vmatprep.subr.mxu0 0.0
    %253 = vmatpush1.msra.mxu0 0.0
    %254 = vmatprep.subr.mxu0 0.0
    %255 = vmatpush1.msra.mxu0 0.0
    %256 = vmatprep.subr.mxu0 0.0
    %257 = vmatpush1.msra.mxu0 0.0
    %258 = vmatprep.subr.mxu0 0.0
    %259 = vmatpush1.msra.mxu0 0.0
    %260 = vmatprep.subr.mxu0 0.0
    %261 = vmatpush1.msra.mxu0 0.0
    %262 = vmatprep.subr.mxu0 0.0
    %263 = vmatpush1.msra.mxu0 0.0
    %264 = vmatprep.subr.mxu0 0.0
    %265 = vmatpush1.msra.mxu0 0.0
    %266 = vmatprep.subr.mxu0 0.0
    %267 = vmatpush1.msra.mxu0 0.0
    %268 = vmatprep.subr.mxu0 0.0
    %269 = vmatpush1.msra.mxu0 0.0
    %270 = vmatprep.subr.mxu0 0.0
    %271 = vmatpush1.msra.mxu0 0.0
    %272 = vmatprep.subr.mxu0 0.0
    %273 = vmatpush1.msra.mxu0 0.0
    %274 = vmatprep.subr.mxu0 0.0
    %275 = vmatpush1.msra.mxu0 0.0
    %276 = vmatprep.subr.mxu0 0.0
    %277 = vmatpush1.msra.mxu0 0.0
    %278 = vmatprep.subr.mxu0 0.0
    %279 = vmatpush1.msra.mxu0 0.0
    %280 = vmatprep.subr.mxu0 0.0
    %281 = vmatpush1.msra.mxu0 0.0
    %282 = vmatprep.subr.mxu0 0.0
    %283 = vmatpush1.msra.mxu0 0.0
    %284 = vmatprep.subr.mxu0 0.0
    %285 = vmatpush1.msra.mxu0 0.0
    %286 = vmatprep.subr.mxu0 0.0
    %287 = vmatpush1.msra.mxu0 0.0
    %288 = vmatprep.subr.mxu0 0.0
    %289 = vmatpush1.msra.mxu0 0.0
    %290 = vmatprep.subr.mxu0 0.0
    %291 = vmatpush1.msra.mxu0 0.0
    %292 = vmatprep.mubr.f32.mxu0 0.0
    %293 = vmatmul.mubr.f32.gmra.mrb[0].mxu0 %v205
    %v294 = vpop.f32.mrb[0].mxu0
    %v295 = vadd.f32 0.0, %v294
    %v296 = vpop.f32.mrb[0].mxu0
    %297 = vmatprep.mubr.f32.mxu0 0.0
    %298 = vmatmul.mubr.f32.gmra.mrb[0].mxu0 %v208
    %v299 = vpop.f32.mrb[0].mxu0
    %v300 = vadd.f32 0.0, %v299
    %v301 = vpop.f32.mrb[0].mxu0
    %v302 = vadd.f32 0.0, %v301
    %303 = vmatprep.mubr.f32.mxu0 0.0
    %304 = vmatmul.mubr.f32.gmra.mrb[0].mxu0 %v211
    %v305 = vpop.f32.mrb[0].mxu0
    %v306 = vadd.f32 0.0, %v305
    %v307 = vpop.f32.mrb[0].mxu0
    %v308 = vadd.f32 0.0, %v307
    %309 = vmatprep.mubr.f32.mxu0 0.0
    %310 = vmatmul.mubr.f32.gmra.mrb[0].mxu0 %v214
    %v311 = vpop.f32.mrb[0].mxu0
    %v312 = vadd.f32 0.0, %v311
    %v313 = vpop.f32.mrb[0].mxu0
    %v314 = vadd.f32 0.0, %v313
    %315 = vmatprep.mubr.f32.mxu0 0.0
    %316 = vmatmul.mubr.f32.gmra.mrb[0].mxu0 %v217
    %v317 = vpop.f32.mrb[0].mxu0
    %v318 = vadd.f32 0.0, %v317
    %v319 = vpop.f32.mrb[0].mxu0
    %v320 = vadd.f32 0.0, %v319
    %321 = vmatprep.mubr.f32.mxu0 0.0
    %322 = vmatmul.mubr.f32.gmra.mrb[0].mxu0 %v220
    %v323 = vpop.f32.mrb[0].mxu0
    %v324 = vadd.f32 0.0, %v323
    %v325 = vpop.f32.mrb[0].mxu0
    %v326 = vadd.f32 0.0, %v325
    %327 = vmatprep.mubr.f32.mxu0 0.0
    %328 = vmatmul.mubr.f32.gmra.mrb[0].mxu0 %v223
    %v329 = vpop.f32.mrb[0].mxu0
    %v330 = vadd.f32 0.0, %v329
    %v331 = vpop.f32.mrb[0].mxu0
    %v332 = vadd.f32 0.0, %v331
    %333 = vmatprep.mubr.f32.mxu0 0.0
    %334 = vmatmul.mubr.f32.gmra.mrb[0].mxu0 %v226
    %v335 = vpop.f32.mrb[0].mxu0
    %v336 = vadd.f32 0.0, %v335
    %v337 = vpop.f32.mrb[0].mxu0
    %v338 = vadd.f32 0.0, %v337
    %339 = vdwg.mxu0
    %340 = vmatprep.subr.mxu0 %v198
    %341 = vmatpush1.msra.mxu0 %v197
    %342 = vmatprep.subr.mxu0 %v202
    %343 = vmatpush1.msra.mxu0 %v201
    %344 = vmatprep.subr.mxu0 0.0
    %345 = vmatpush1.msra.mxu0 0.0
    %346 = vmatprep.subr.mxu0 0.0
    %347 = vmatpush1.msra.mxu0 0.0
    %348 = vmatprep.subr.mxu0 0.0
    %349 = vmatpush1.msra.mxu0 0.0
    %350 = vmatprep.subr.mxu0 0.0
    %351 = vmatpush1.msra.mxu0 0.0
    %352 = vmatprep.subr.mxu0 0.0
    %353 = vmatpush1.msra.mxu0 0.0
    %354 = vmatprep.subr.mxu0 0.0
    %355 = vmatpush1.msra.mxu0 0.0
    %356 = vmatprep.subr.mxu0 0.0
    %357 = vmatpush1.msra.mxu0 0.0
    %358 = vmatprep.subr.mxu0 0.0
    %359 = vmatpush1.msra.mxu0 0.0
    %360 = vmatprep.subr.mxu0 0.0
    %361 = vmatpush1.msra.mxu0 0.0
    %362 = vmatprep.subr.mxu0 0.0
    %363 = vmatpush1.msra.mxu0 0.0
    %364 = vmatprep.subr.mxu0 0.0
    %365 = vmatpush1.msra.mxu0 0.0
    %366 = vmatprep.subr.mxu0 0.0
    %367 = vmatpush1.msra.mxu0 0.0
    %368 = vmatprep.subr.mxu0 0.0
    %369 = vmatpush1.msra.mxu0 0.0
    %370 = vmatprep.subr.mxu0 0.0
    %371 = vmatpush1.msra.mxu0 0.0
    %372 = vmatprep.subr.mxu0 0.0
    %373 = vmatpush1.msra.mxu0 0.0
    %374 = vmatprep.subr.mxu0 0.0
    %375 = vmatpush1.msra.mxu0 0.0
    %376 = vmatprep.subr.mxu0 0.0
    %377 = vmatpush1.msra.mxu0 0.0
    %378 = vmatprep.subr.mxu0 0.0
    %379 = vmatpush1.msra.mxu0 0.0
    %380 = vmatprep.subr.mxu0 0.0
    %381 = vmatpush1.msra.mxu0 0.0
    %382 = vmatprep.subr.mxu0 0.0
    %383 = vmatpush1.msra.mxu0 0.0
    %384 = vmatprep.subr.mxu0 0.0
    %385 = vmatpush1.msra.mxu0 0.0
    %386 = vmatprep.subr.mxu0 0.0
    %387 = vmatpush1.msra.mxu0 0.0
    %388 = vmatprep.subr.mxu0 0.0
    %389 = vmatpush1.msra.mxu0 0.0
    %390 = vmatprep.subr.mxu0 0.0
    %391 = vmatpush1.msra.mxu0 0.0
    %392 = vmatprep.subr.mxu0 0.0
    %393 = vmatpush1.msra.mxu0 0.0
    %394 = vmatprep.subr.mxu0 0.0
    %395 = vmatpush1.msra.mxu0 0.0
    %396 = vmatprep.subr.mxu0 0.0
    %397 = vmatpush1.msra.mxu0 0.0
    %398 = vmatprep.subr.mxu0 0.0
    %399 = vmatpush1.msra.mxu0 0.0
    %400 = vmatprep.subr.mxu0 0.0
    %401 = vmatpush1.msra.mxu0 0.0
    %402 = vmatprep.subr.mxu0 0.0
    %403 = vmatpush1.msra.mxu0 0.0
    %404 = vmatprep.mubr.f32.mxu0 0.0
    %405 = vmatmul.mubr.f32.gmra.mrb[0].mxu0 %v205
    %v406 = vpop.f32.mrb[0].mxu0
    %v407 = vadd.f32 0.0, %v406
    %v408 = vpop.f32.mrb[0].mxu0
    %v409 = vadd.f32 0.0, %v408
    %410 = vmatprep.mubr.f32.mxu0 0.0
    %411 = vmatmul.mubr.f32.gmra.mrb[0].mxu0 %v208
    %v412 = vpop.f32.mrb[0].mxu0
    %v413 = vadd.f32 0.0, %v412
    %v414 = vpop.f32.mrb[0].mxu0
    %v415 = vadd.f32 0.0, %v414
    %416 = vmatprep.mubr.f32.mxu0 0.0
    %417 = vmatmul.mubr.f32.gmra.mrb[0].mxu0 %v211
    %v418 = vpop.f32.mrb[0].mxu0
    %v419 = vadd.f32 0.0, %v418
    %v420 = vpop.f32.mrb[0].mxu0
    %v421 = vadd.f32 0.0, %v420
    %422 = vmatprep.mubr.f32.mxu0 0.0
    %423 = vmatmul.mubr.f32.gmra.mrb[0].mxu0 %v214
    %v424 = vpop.f32.mrb[0].mxu0
    %v425 = vadd.f32 0.0, %v424
    %v426 = vpop.f32.mrb[0].mxu0
    %v427 = vadd.f32 0.0, %v426
    %428 = vmatprep.mubr.f32.mxu0 0.0
    %429 = vmatmul.mubr.f32.gmra.mrb[0].mxu0 %v217
    %v430 = vpop.f32.mrb[0].mxu0
    %v431 = vadd.f32 0.0, %v430
    %v432 = vpop.f32.mrb[0].mxu0
    %v433 = vadd.f32 0.0, %v432
    %434 = vmatprep.mubr.f32.mxu0 0.0
    %435 = vmatmul.mubr.f32.gmra.mrb[0].mxu0 %v220
    %v436 = vpop.f32.mrb[0].mxu0
    %v437 = vadd.f32 0.0, %v436
    %v438 = vpop.f32.mrb[0].mxu0
    %v439 = vadd.f32 0.0, %v438
    %440 = vmatprep.mubr.f32.mxu0 0.0
    %441 = vmatmul.mubr.f32.gmra.mrb[0].mxu0 %v223
    %v442 = vpop.f32.mrb[0].mxu0
    %v443 = vadd.f32 0.0, %v442
    %v444 = vpop.f32.mrb[0].mxu0
    %v445 = vadd.f32 0.0, %v444
    %446 = vmatprep.mubr.f32.mxu0 0.0
    %447 = vmatmul.mubr.f32.gmra.mrb[0].mxu0 %v226
    %v448 = vpop.f32.mrb[0].mxu0
    %v449 = vadd.f32 0.0, %v448
    %v450 = vpop.f32.mrb[0].mxu0
    %v451 = vadd.f32 0.0, %v450
    %452 = vdwg.mxu0
    %vm453 = vcmask 261120
    %v455 = vsel %vm453, %v163, 0
    %v458 = vsel %vm453, %v164, 0
    %v461 = vsel %vm453, %v165, 0
    %v464 = vsel %vm453, %v166, 0
    %v467 = vsel %vm453, %v167, 0
    %v470 = vsel %vm453, %v168, 0
    %v473 = vsel %vm453, %v169, 0
    %v476 = vsel %vm453, %v170, 0
    %478 = vmatprep.subr.mxu0 %v172
    %479 = vmatpush1.msra.mxu0 %v171
    %480 = vmatprep.subr.mxu0 %v176
    %481 = vmatpush1.msra.mxu0 %v175
    %482 = vmatprep.subr.mxu0 %v180
    %483 = vmatpush1.msra.mxu0 %v179
    %484 = vmatprep.subr.mxu0 %v184
    %485 = vmatpush1.msra.mxu0 %v183
    %486 = vmatprep.subr.mxu0 0.0
    %487 = vmatpush1.msra.mxu0 0.0
    %488 = vmatprep.subr.mxu0 0.0
    %489 = vmatpush1.msra.mxu0 0.0
    %490 = vmatprep.subr.mxu0 0.0
    %491 = vmatpush1.msra.mxu0 0.0
    %492 = vmatprep.subr.mxu0 0.0
    %493 = vmatpush1.msra.mxu0 0.0
    %494 = vmatprep.subr.mxu0 0.0
    %495 = vmatpush1.msra.mxu0 0.0
    %496 = vmatprep.subr.mxu0 0.0
    %497 = vmatpush1.msra.mxu0 0.0
    %498 = vmatprep.subr.mxu0 0.0
    %499 = vmatpush1.msra.mxu0 0.0
    %500 = vmatprep.subr.mxu0 0.0
    %501 = vmatpush1.msra.mxu0 0.0
    %502 = vmatprep.subr.mxu0 0.0
    %503 = vmatpush1.msra.mxu0 0.0
    %504 = vmatprep.subr.mxu0 0.0
    %505 = vmatpush1.msra.mxu0 0.0
    %506 = vmatprep.subr.mxu0 0.0
    %507 = vmatpush1.msra.mxu0 0.0
    %508 = vmatprep.subr.mxu0 0.0
    %509 = vmatpush1.msra.mxu0 0.0
    %510 = vmatprep.subr.mxu0 0.0
    %511 = vmatpush1.msra.mxu0 0.0
    %512 = vmatprep.subr.mxu0 0.0
    %513 = vmatpush1.msra.mxu0 0.0
    %514 = vmatprep.subr.mxu0 0.0
    %515 = vmatpush1.msra.mxu0 0.0
    %516 = vmatprep.subr.mxu0 0.0
    %517 = vmatpush1.msra.mxu0 0.0
    %518 = vmatprep.subr.mxu0 0.0
    %519 = vmatpush1.msra.mxu0 0.0
    %520 = vmatprep.subr.mxu0 0.0
    %521 = vmatpush1.msra.mxu0 0.0
    %522 = vmatprep.subr.mxu0 0.0
    %523 = vmatpush1.msra.mxu0 0.0
    %524 = vmatprep.subr.mxu0 0.0
    %525 = vmatpush1.msra.mxu0 0.0
    %526 = vmatprep.subr.mxu0 0.0
    %527 = vmatpush1.msra.mxu0 0.0
    %528 = vmatprep.subr.mxu0 0.0
    %529 = vmatpush1.msra.mxu0 0.0
    %530 = vmatprep.subr.mxu0 0.0
    %531 = vmatpush1.msra.mxu0 0.0
    %532 = vmatprep.subr.mxu0 0.0
    %533 = vmatpush1.msra.mxu0 0.0
    %534 = vmatprep.subr.mxu0 0.0
    %535 = vmatpush1.msra.mxu0 0.0
    %536 = vmatprep.subr.mxu0 0.0
    %537 = vmatpush1.msra.mxu0 0.0
    %538 = vmatprep.subr.mxu0 0.0
    %539 = vmatpush1.msra.mxu0 0.0
    %540 = vmatprep.subr.mxu0 0.0
    %541 = vmatpush1.msra.mxu0 0.0
    %542 = vmatprep.mubr.f32.mxu0 0.0
    %543 = vmatmul.mubr.f32.gmra.mrb[0].mxu0 %v455
    %v544 = vpop.f32.mrb[0].mxu0
    %v545 = vadd.f32 %v295, %v544
    %v546 = vpop.f32.mrb[0].mxu0
    %547 = vmatprep.mubr.f32.mxu0 0.0
    %548 = vmatmul.mubr.f32.gmra.mrb[0].mxu0 %v458
    %v549 = vpop.f32.mrb[0].mxu0
    %v550 = vadd.f32 %v300, %v549
    %v551 = vpop.f32.mrb[0].mxu0
    %v552 = vadd.f32 %v302, %v551
    %553 = vmatprep.mubr.f32.mxu0 0.0
    %554 = vmatmul.mubr.f32.gmra.mrb[0].mxu0 %v461
    %v555 = vpop.f32.mrb[0].mxu0
    %v556 = vadd.f32 %v306, %v555
    %v557 = vpop.f32.mrb[0].mxu0
    %v558 = vadd.f32 %v308, %v557
    %559 = vmatprep.mubr.f32.mxu0 0.0
    %560 = vmatmul.mubr.f32.gmra.mrb[0].mxu0 %v464
    %v561 = vpop.f32.mrb[0].mxu0
    %v562 = vadd.f32 %v312, %v561
    %v563 = vpop.f32.mrb[0].mxu0
    %v564 = vadd.f32 %v314, %v563
    %565 = vmatprep.mubr.f32.mxu0 0.0
    %566 = vmatmul.mubr.f32.gmra.mrb[0].mxu0 %v467
    %v567 = vpop.f32.mrb[0].mxu0
    %v568 = vadd.f32 %v318, %v567
    %v569 = vpop.f32.mrb[0].mxu0
    %v570 = vadd.f32 %v320, %v569
    %571 = vmatprep.mubr.f32.mxu0 0.0
    %572 = vmatmul.mubr.f32.gmra.mrb[0].mxu0 %v470
    %v573 = vpop.f32.mrb[0].mxu0
    %v574 = vadd.f32 %v324, %v573
    %v575 = vpop.f32.mrb[0].mxu0
    %v576 = vadd.f32 %v326, %v575
    %577 = vmatprep.mubr.f32.mxu0 0.0
    %578 = vmatmul.mubr.f32.gmra.mrb[0].mxu0 %v473
    %v579 = vpop.f32.mrb[0].mxu0
    %v580 = vadd.f32 %v330, %v579
    %v581 = vpop.f32.mrb[0].mxu0
    %v582 = vadd.f32 %v332, %v581
    %583 = vmatprep.mubr.f32.mxu0 0.0
    %584 = vmatmul.mubr.f32.gmra.mrb[0].mxu0 %v476
    %v585 = vpop.f32.mrb[0].mxu0
    %v586 = vadd.f32 %v336, %v585
    %v587 = vpop.f32.mrb[0].mxu0
    %v588 = vadd.f32 %v338, %v587
    %589 = vdwg.mxu0
    %590 = vmatprep.subr.mxu0 %v174
    %591 = vmatpush1.msra.mxu0 %v173
    %592 = vmatprep.subr.mxu0 %v178
    %593 = vmatpush1.msra.mxu0 %v177
    %594 = vmatprep.subr.mxu0 %v182
    %595 = vmatpush1.msra.mxu0 %v181
    %596 = vmatprep.subr.mxu0 %v186
    %597 = vmatpush1.msra.mxu0 %v185
    %598 = vmatprep.subr.mxu0 0.0
    %599 = vmatpush1.msra.mxu0 0.0
    %600 = vmatprep.subr.mxu0 0.0
    %601 = vmatpush1.msra.mxu0 0.0
    %602 = vmatprep.subr.mxu0 0.0
    %603 = vmatpush1.msra.mxu0 0.0
    %604 = vmatprep.subr.mxu0 0.0
    %605 = vmatpush1.msra.mxu0 0.0
    %606 = vmatprep.subr.mxu0 0.0
    %607 = vmatpush1.msra.mxu0 0.0
    %608 = vmatprep.subr.mxu0 0.0
    %609 = vmatpush1.msra.mxu0 0.0
    %610 = vmatprep.subr.mxu0 0.0
    %611 = vmatpush1.msra.mxu0 0.0
    %612 = vmatprep.subr.mxu0 0.0
    %613 = vmatpush1.msra.mxu0 0.0
    %614 = vmatprep.subr.mxu0 0.0
    %615 = vmatpush1.msra.mxu0 0.0
    %616 = vmatprep.subr.mxu0 0.0
    %617 = vmatpush1.msra.mxu0 0.0
    %618 = vmatprep.subr.mxu0 0.0
    %619 = vmatpush1.msra.mxu0 0.0
    %620 = vmatprep.subr.mxu0 0.0
    %621 = vmatpush1.msra.mxu0 0.0
    %622 = vmatprep.subr.mxu0 0.0
    %623 = vmatpush1.msra.mxu0 0.0
    %624 = vmatprep.subr.mxu0 0.0
    %625 = vmatpush1.msra.mxu0 0.0
    %626 = vmatprep.subr.mxu0 0.0
    %627 = vmatpush1.msra.mxu0 0.0
    %628 = vmatprep.subr.mxu0 0.0
    %629 = vmatpush1.msra.mxu0 0.0
    %630 = vmatprep.subr.mxu0 0.0
    %631 = vmatpush1.msra.mxu0 0.0
    %632 = vmatprep.subr.mxu0 0.0
    %633 = vmatpush1.msra.mxu0 0.0
    %634 = vmatprep.subr.mxu0 0.0
    %635 = vmatpush1.msra.mxu0 0.0
    %636 = vmatprep.subr.mxu0 0.0
    %637 = vmatpush1.msra.mxu0 0.0
    %638 = vmatprep.subr.mxu0 0.0
    %639 = vmatpush1.msra.mxu0 0.0
    %640 = vmatprep.subr.mxu0 0.0
    %641 = vmatpush1.msra.mxu0 0.0
    %642 = vmatprep.subr.mxu0 0.0
    %643 = vmatpush1.msra.mxu0 0.0
    %644 = vmatprep.subr.mxu0 0.0
    %645 = vmatpush1.msra.mxu0 0.0
    %646 = vmatprep.subr.mxu0 0.0
    %647 = vmatpush1.msra.mxu0 0.0
    %648 = vmatprep.subr.mxu0 0.0
    %649 = vmatpush1.msra.mxu0 0.0
    %650 = vmatprep.subr.mxu0 0.0
    %651 = vmatpush1.msra.mxu0 0.0
    %652 = vmatprep.subr.mxu0 0.0
    %653 = vmatpush1.msra.mxu0 0.0
    %654 = vmatprep.mubr.f32.mxu0 0.0
    %655 = vmatmul.mubr.f32.gmra.mrb[0].mxu0 %v455
    %v656 = vpop.f32.mrb[0].mxu0
    %v657 = vadd.f32 %v407, %v656
    %v658 = vpop.f32.mrb[0].mxu0
    %v659 = vadd.f32 %v409, %v658
    %660 = vmatprep.mubr.f32.mxu0 0.0
    %661 = vmatmul.mubr.f32.gmra.mrb[0].mxu0 %v458
    %v662 = vpop.f32.mrb[0].mxu0
    %v663 = vadd.f32 %v413, %v662
    %v664 = vpop.f32.mrb[0].mxu0
    %v665 = vadd.f32 %v415, %v664
    %666 = vmatprep.mubr.f32.mxu0 0.0
    %667 = vmatmul.mubr.f32.gmra.mrb[0].mxu0 %v461
    %v668 = vpop.f32.mrb[0].mxu0
    %v669 = vadd.f32 %v419, %v668
    %v670 = vpop.f32.mrb[0].mxu0
    %v671 = vadd.f32 %v421, %v670
    %672 = vmatprep.mubr.f32.mxu0 0.0
    %673 = vmatmul.mubr.f32.gmra.mrb[0].mxu0 %v464
    %v674 = vpop.f32.mrb[0].mxu0
    %v675 = vadd.f32 %v425, %v674
    %v676 = vpop.f32.mrb[0].mxu0
    %v677 = vadd.f32 %v427, %v676
    %678 = vmatprep.mubr.f32.mxu0 0.0
    %679 = vmatmul.mubr.f32.gmra.mrb[0].mxu0 %v467
    %v680 = vpop.f32.mrb[0].mxu0
    %v681 = vadd.f32 %v431, %v680
    %v682 = vpop.f32.mrb[0].mxu0
    %v683 = vadd.f32 %v433, %v682
    %684 = vmatprep.mubr.f32.mxu0 0.0
    %685 = vmatmul.mubr.f32.gmra.mrb[0].mxu0 %v470
    %v686 = vpop.f32.mrb[0].mxu0
    %v687 = vadd.f32 %v437, %v686
    %v688 = vpop.f32.mrb[0].mxu0
    %v689 = vadd.f32 %v439, %v688
    %690 = vmatprep.mubr.f32.mxu0 0.0
    %691 = vmatmul.mubr.f32.gmra.mrb[0].mxu0 %v473
    %v692 = vpop.f32.mrb[0].mxu0
    %v693 = vadd.f32 %v443, %v692
    %v694 = vpop.f32.mrb[0].mxu0
    %v695 = vadd.f32 %v445, %v694
    %696 = vmatprep.mubr.f32.mxu0 0.0
    %697 = vmatmul.mubr.f32.gmra.mrb[0].mxu0 %v476
    %v698 = vpop.f32.mrb[0].mxu0
    %v699 = vadd.f32 %v449, %v698
    %v700 = vpop.f32.mrb[0].mxu0
    %v701 = vadd.f32 %v451, %v700
    %702 = vdwg.mxu0
    %v703 = vld [vmem:[#allocation2] sm:$0xf]
    %v705 = vlaneseq
    %v706 = vshrl.u32 %v705, 7
    %v707 = vsub.s32 0, %v706
    %v708 = vrot.slane %v703, %v707
    %v709 = vlaneseq
    %v710 = vshrl.u32 %v709, 7
    %v711 = vsub.s32 1, %v710
    %v712 = vrot.slane %v703, %v711
    %v713 = vlaneseq
    %v714 = vshrl.u32 %v713, 7
    %v715 = vsub.s32 2, %v714
    %v716 = vrot.slane %v703, %v715
    %v717 = vlaneseq
    %v718 = vshrl.u32 %v717, 7
    %v719 = vsub.s32 3, %v718
    %v720 = vrot.slane %v703, %v719
    %v725 = vadd.f32 %v545, %v708
    %v726 = vadd.f32 %v657, %v716
    %v727 = vadd.f32 %v659, %v720
    %v728 = vadd.f32 %v550, %v708
    %v729 = vadd.f32 %v552, %v712
    %v730 = vadd.f32 %v663, %v716
    %v731 = vadd.f32 %v665, %v720
    %v732 = vadd.f32 %v556, %v708
    %v733 = vadd.f32 %v558, %v712
    %v734 = vadd.f32 %v669, %v716
    %v735 = vadd.f32 %v671, %v720
    %v736 = vadd.f32 %v562, %v708
    %v737 = vadd.f32 %v564, %v712
    %v738 = vadd.f32 %v675, %v716
    %v739 = vadd.f32 %v677, %v720
    %v740 = vadd.f32 %v568, %v708
    %v741 = vadd.f32 %v570, %v712
    %v742 = vadd.f32 %v681, %v716
    %v743 = vadd.f32 %v683, %v720
    %v744 = vadd.f32 %v574, %v708
    %v745 = vadd.f32 %v576, %v712
    %v746 = vadd.f32 %v687, %v716
    %v747 = vadd.f32 %v689, %v720
    %v748 = vadd.f32 %v580, %v708
    %v749 = vadd.f32 %v582, %v712
    %v750 = vadd.f32 %v693, %v716
    %v751 = vadd.f32 %v695, %v720
    %v752 = vadd.f32 %v586, %v708
    %v753 = vadd.f32 %v588, %v712
    %v754 = vadd.f32 %v699, %v716
    %v755 = vadd.f32 %v701, %v720
    %v756 = vld [vmem:[%s5] sm:$0xff]
    %v757 = vld [vmem:[%s5 + $0x8] sm:$0xff]
    %v758 = vld [vmem:[%s5 + $0x10] sm:$0xff]
    %v759 = vld [vmem:[%s5 + $0x18] sm:$0xff]
    %v760 = vld [vmem:[%s5 + $0x20] sm:$0xff]
    %v761 = vld [vmem:[%s5 + $0x28] sm:$0xff]
    %v762 = vld [vmem:[%s5 + $0x30] sm:$0xff]
    %v763 = vld [vmem:[%s5 + $0x38] sm:$0xff]
    %v764 = vld [vmem:[%s5 + $0x40] sm:$0xff]
    %v765 = vld [vmem:[%s5 + $0x48] sm:$0xff]
    %v766 = vld [vmem:[%s5 + $0x50] sm:$0xff]
    %v767 = vld [vmem:[%s5 + $0x58] sm:$0xff]
    %v768 = vld [vmem:[%s5 + $0x60] sm:$0xff]
    %v769 = vld [vmem:[%s5 + $0x68] sm:$0xff]
    %v770 = vld [vmem:[%s5 + $0x70] sm:$0xff]
    %v771 = vld [vmem:[%s5 + $0x78] sm:$0xff]
    %v772 = vld [vmem:[%s5 + $0x80] sm:$0xff]
    %v773 = vld [vmem:[%s5 + $0x88] sm:$0xff]
    %v774 = vld [vmem:[%s5 + $0x90] sm:$0xff]
    %v775 = vld [vmem:[%s5 + $0x98] sm:$0xff]
    %v776 = vld [vmem:[%s5 + $0xa0] sm:$0xff]
    %v777 = vld [vmem:[%s5 + $0xa8] sm:$0xff]
    %v778 = vld [vmem:[%s5 + $0xb0] sm:$0xff]
    %v779 = vld [vmem:[%s5 + $0xb8] sm:$0xff]
    %v780 = vld [vmem:[%s5 + $0xc0] sm:$0xff]
    %v781 = vld [vmem:[%s5 + $0xc8] sm:$0xff]
    %v782 = vld [vmem:[%s5 + $0xd0] sm:$0xff]
    %v783 = vld [vmem:[%s5 + $0xd8] sm:$0xff]
    %v784 = vld [vmem:[%s5 + $0xe0] sm:$0xff]
    %v785 = vld [vmem:[%s5 + $0xe8] sm:$0xff]
    %v786 = vld [vmem:[%s5 + $0xf0] sm:$0xff]
    %v787 = vld [vmem:[%s5 + $0xf8] sm:$0xff]
    %v788 = vxor.u32 %v725, 2147483648
    %v789 = vxor.u32 %v726, 2147483648
    %v790 = vmul.f32 %v788, 1.442695
    %v791 = vpow.pop %v790
    %v792 = vmul.f32 %v789, 1.442695
    %v793 = vpow.pop %v792
    %v794 = vadd.f32 %v791, 1.0
    %v795 = vadd.f32 %v793, 1.0
    %v796 = vrcp.pop %v794
    %v797 = vmul.f32 1.0, %v796
    %v798 = vrcp.pop %v795
    %v799 = vmul.f32 1.0, %v798
    %v800 = vtanh.pop %v727
    %v801 = vmul.f32 %v797, %v800
    %v802 = vtanh.pop %v801
    %v803 = vmul.f32 %v799, %v802
    %v804 = vpack.c.bf16 %v803, %v803
    %v837 = vunpack.c.l.b16 %v756
    %v838 = vunpack.c.h.b16 %v756
    %v839 = vunpack.c.l.b16 %v757
    %v840 = vunpack.c.h.b16 %v757
    %v841 = vunpack.c.l.b16 %v758
    %v842 = vunpack.c.h.b16 %v758
    %v843 = vunpack.c.l.b16 %v759
    %v844 = vunpack.c.h.b16 %v759
    %v845 = vunpack.c.l.b16 %v760
    %v846 = vunpack.c.h.b16 %v760
    %v847 = vunpack.c.l.b16 %v761
    %v848 = vunpack.c.h.b16 %v761
    %v849 = vunpack.c.l.b16 %v762
    %v850 = vunpack.c.h.b16 %v762
    %v851 = vunpack.c.l.b16 %v763
    %v852 = vunpack.c.h.b16 %v763
    %v853 = vunpack.c.l.b16 %v764
    %v854 = vunpack.c.h.b16 %v764
    %v855 = vunpack.c.l.b16 %v765
    %v856 = vunpack.c.h.b16 %v765
    %v857 = vunpack.c.l.b16 %v766
    %v858 = vunpack.c.h.b16 %v766
    %v859 = vunpack.c.l.b16 %v767
    %v860 = vunpack.c.h.b16 %v767
    %v861 = vunpack.c.l.b16 %v768
    %v862 = vunpack.c.h.b16 %v768
    %v863 = vunpack.c.l.b16 %v769
    %v864 = vunpack.c.h.b16 %v769
    %v865 = vunpack.c.l.b16 %v770
    %v866 = vunpack.c.h.b16 %v770
    %v867 = vunpack.c.l.b16 %v771
    %v868 = vunpack.c.h.b16 %v771
    %v869 = vunpack.c.l.b16 %v772
    %v870 = vunpack.c.h.b16 %v772
    %v871 = vunpack.c.l.b16 %v773
    %v872 = vunpack.c.h.b16 %v773
    %v873 = vunpack.c.l.b16 %v774
    %v874 = vunpack.c.h.b16 %v774
    %v875 = vunpack.c.l.b16 %v775
    %v876 = vunpack.c.h.b16 %v775
    %v877 = vunpack.c.l.b16 %v776
    %v878 = vunpack.c.h.b16 %v776
    %v879 = vunpack.c.l.b16 %v777
    %v880 = vunpack.c.h.b16 %v777
    %v881 = vunpack.c.l.b16 %v778
    %v882 = vunpack.c.h.b16 %v778
    %v883 = vunpack.c.l.b16 %v779
    %v884 = vunpack.c.h.b16 %v779
    %v885 = vunpack.c.l.b16 %v780
    %v886 = vunpack.c.h.b16 %v780
    %v887 = vunpack.c.l.b16 %v781
    %v888 = vunpack.c.h.b16 %v781
    %v889 = vunpack.c.l.b16 %v782
    %v890 = vunpack.c.h.b16 %v782
    %v891 = vunpack.c.l.b16 %v783
    %v892 = vunpack.c.h.b16 %v783
    %v893 = vunpack.c.l.b16 %v784
    %v894 = vunpack.c.h.b16 %v784
    %v895 = vunpack.c.l.b16 %v785
    %v896 = vunpack.c.h.b16 %v785
    %v897 = vunpack.c.l.b16 %v786
    %v898 = vunpack.c.h.b16 %v786
    %v899 = vunpack.c.l.b16 %v787
    %v900 = vunpack.c.h.b16 %v787
    %v901 = vpack.c.b16 %v841, %v837
    %v902 = vpack.c.b16 %v842, %v838
    %v903 = vpack.c.b16 %v843, %v839
    %v904 = vpack.c.b16 %v844, %v840
    %v905 = vpack.c.b16 %v849, %v845
    %v906 = vpack.c.b16 %v850, %v846
    %v907 = vpack.c.b16 %v851, %v847
    %v908 = vpack.c.b16 %v852, %v848
    %v909 = vpack.c.b16 %v857, %v853
    %v910 = vpack.c.b16 %v858, %v854
    %v911 = vpack.c.b16 %v859, %v855
    %v912 = vpack.c.b16 %v860, %v856
    %v913 = vpack.c.b16 %v865, %v861
    %v914 = vpack.c.b16 %v866, %v862
    %v915 = vpack.c.b16 %v867, %v863
    %v916 = vpack.c.b16 %v868, %v864
    %v917 = vpack.c.b16 %v873, %v869
    %v918 = vpack.c.b16 %v874, %v870
    %v919 = vpack.c.b16 %v875, %v871
    %v920 = vpack.c.b16 %v876, %v872
    %v921 = vpack.c.b16 %v881, %v877
    %v922 = vpack.c.b16 %v882, %v878
    %v923 = vpack.c.b16 %v883, %v879
    %v924 = vpack.c.b16 %v884, %v880
    %v925 = vpack.c.b16 %v889, %v885
    %v926 = vpack.c.b16 %v890, %v886
    %v927 = vpack.c.b16 %v891, %v887
    %v928 = vpack.c.b16 %v892, %v888
    %v929 = vpack.c.b16 %v897, %v893
    %v930 = vpack.c.b16 %v898, %v894
    %v931 = vpack.c.b16 %v899, %v895
    %v932 = vpack.c.b16 %v900, %v896
    %965 = vmatprep.subr.bf16.mxu0 %v902
    %966 = vmatpush1.bf16.msra.mxu0 %v901
    %967 = vmatprep.subr.bf16.mxu0 %v906
    %968 = vmatpush1.bf16.msra.mxu0 %v905
    %969 = vmatprep.subr.bf16.mxu0 %v910
    %970 = vmatpush1.bf16.msra.mxu0 %v909
    %971 = vmatprep.subr.bf16.mxu0 %v914
    %972 = vmatpush1.bf16.msra.mxu0 %v913
    %973 = vmatprep.subr.bf16.mxu0 %v918
    %974 = vmatpush1.bf16.msra.mxu0 %v917
    %975 = vmatprep.subr.bf16.mxu0 %v922
    %976 = vmatpush1.bf16.msra.mxu0 %v921
    %977 = vmatprep.subr.bf16.mxu0 %v926
    %978 = vmatpush1.bf16.msra.mxu0 %v925
    %979 = vmatprep.subr.bf16.mxu0 %v930
    %980 = vmatpush1.bf16.msra.mxu0 %v929
    %981 = vmatprep.subr.bf16.mxu0 0
    %982 = vmatpush1.bf16.msra.mxu0 0
    %983 = vmatprep.subr.bf16.mxu0 0
    %984 = vmatpush1.bf16.msra.mxu0 0
    %985 = vmatprep.subr.bf16.mxu0 0
    %986 = vmatpush1.bf16.msra.mxu0 0
    %987 = vmatprep.subr.bf16.mxu0 0
    %988 = vmatpush1.bf16.msra.mxu0 0
    %989 = vmatprep.subr.bf16.mxu0 0
    %990 = vmatpush1.bf16.msra.mxu0 0
    %991 = vmatprep.subr.bf16.mxu0 0
    %992 = vmatpush1.bf16.msra.mxu0 0
    %993 = vmatprep.subr.bf16.mxu0 0
    %994 = vmatpush1.bf16.msra.mxu0 0
    %995 = vmatprep.subr.bf16.mxu0 0
    %996 = vmatpush1.bf16.msra.mxu0 0
    %997 = vmatprep.mubr.bf16.mxu0 0
    %998 = vmatmul.mubr.bf16.gmra.mrb[0].mxu0 %v804
    %v999 = vpop.f32.mrb[0].mxu0
    %v1000 = vadd.f32 0.0, %v999
    %v1001 = vpop.f32.mrb[0].mxu0
    %v1002 = vadd.f32 0.0, %v1001
    %v1003 = vpop.f32.mrb[0].mxu0
    %v1004 = vpop.f32.mrb[0].mxu0
    %1005 = vdwg.mxu0
    %1006 = vmatprep.subr.bf16.mxu0 %v904
    %1007 = vmatpush1.bf16.msra.mxu0 %v903
    %1008 = vmatprep.subr.bf16.mxu0 %v908
    %1009 = vmatpush1.bf16.msra.mxu0 %v907
    %1010 = vmatprep.subr.bf16.mxu0 %v912
    %1011 = vmatpush1.bf16.msra.mxu0 %v911
    %1012 = vmatprep.subr.bf16.mxu0 %v916
    %1013 = vmatpush1.bf16.msra.mxu0 %v915
    %1014 = vmatprep.subr.bf16.mxu0 %v920
    %1015 = vmatpush1.bf16.msra.mxu0 %v919
    %1016 = vmatprep.subr.bf16.mxu0 %v924
    %1017 = vmatpush1.bf16.msra.mxu0 %v923
    %1018 = vmatprep.subr.bf16.mxu0 %v928
    %1019 = vmatpush1.bf16.msra.mxu0 %v927
    %1020 = vmatprep.subr.bf16.mxu0 %v932
    %1021 = vmatpush1.bf16.msra.mxu0 %v931
    %1022 = vmatprep.subr.bf16.mxu0 0
    %1023 = vmatpush1.bf16.msra.mxu0 0
    %1024 = vmatprep.subr.bf16.mxu0 0
    %1025 = vmatpush1.bf16.msra.mxu0 0
    %1026 = vmatprep.subr.bf16.mxu0 0
    %1027 = vmatpush1.bf16.msra.mxu0 0
    %1028 = vmatprep.subr.bf16.mxu0 0
    %1029 = vmatpush1.bf16.msra.mxu0 0
    %1030 = vmatprep.subr.bf16.mxu0 0
    %1031 = vmatpush1.bf16.msra.mxu0 0
    %1032 = vmatprep.subr.bf16.mxu0 0
    %1033 = vmatpush1.bf16.msra.mxu0 0
    %1034 = vmatprep.subr.bf16.mxu0 0
    %1035 = vmatpush1.bf16.msra.mxu0 0
    %1036 = vmatprep.subr.bf16.mxu0 0
    %1037 = vmatpush1.bf16.msra.mxu0 0
    %1038 = vmatprep.mubr.bf16.mxu0 0
    %1039 = vmatmul.mubr.bf16.gmra.mrb[0].mxu0 %v804
    %v1040 = vpop.f32.mrb[0].mxu0
    %v1041 = vadd.f32 0.0, %v1040
    %v1042 = vpop.f32.mrb[0].mxu0
    %v1043 = vadd.f32 0.0, %v1042
    %v1044 = vpop.f32.mrb[0].mxu0
    %v1045 = vpop.f32.mrb[0].mxu0
    %1046 = vdwg.mxu0
    %v1047 = vadd.f32 %v728, %v1000
    %v1048 = vadd.f32 %v729, %v1002
    %v1049 = vadd.f32 %v730, %v1041
    %v1050 = vadd.f32 %v731, %v1043
    %v1051 = vxor.u32 %v1047, 2147483648
    %v1052 = vxor.u32 %v1048, 2147483648
    %v1053 = vxor.u32 %v1049, 2147483648
    %v1054 = vmul.f32 %v1051, 1.442695
    %v1055 = vpow.pop %v1054
    %v1056 = vmul.f32 %v1052, 1.442695
    %v1057 = vpow.pop %v1056
    %v1058 = vmul.f32 %v1053, 1.442695
    %v1059 = vpow.pop %v1058
    %v1060 = vadd.f32 %v1055, 1.0
    %v1061 = vadd.f32 %v1057, 1.0
    %v1062 = vadd.f32 %v1059, 1.0
    %v1063 = vrcp.pop %v1060
    %v1064 = vmul.f32 1.0, %v1063
    %v1065 = vrcp.pop %v1061
    %v1066 = vmul.f32 1.0, %v1065
    %v1067 = vrcp.pop %v1062
    %v1068 = vmul.f32 1.0, %v1067
    %v1069 = vtanh.pop %v1050
    %v1070 = vmul.f32 %v1066, %v801
    %v1071 = vmul.f32 %v1064, %v1069
    %v1072 = vadd.f32 %v1070, %v1071
    %v1073 = vtanh.pop %v1072
    %v1074 = vmul.f32 %v1068, %v1073
    %v1075 = vpack.c.bf16 %v1074, %v1074
    %1076 = vmatprep.subr.bf16.mxu0 %v902
    %1077 = vmatpush1.bf16.msra.mxu0 %v901
    %1078 = vmatprep.subr.bf16.mxu0 %v906
    %1079 = vmatpush1.bf16.msra.mxu0 %v905
    %1080 = vmatprep.subr.bf16.mxu0 %v910
    %1081 = vmatpush1.bf16.msra.mxu0 %v909
    %1082 = vmatprep.subr.bf16.mxu0 %v914
    %1083 = vmatpush1.bf16.msra.mxu0 %v913
    %1084 = vmatprep.subr.bf16.mxu0 %v918
    %1085 = vmatpush1.bf16.msra.mxu0 %v917
    %1086 = vmatprep.subr.bf16.mxu0 %v922
    %1087 = vmatpush1.bf16.msra.mxu0 %v921
    %1088 = vmatprep.subr.bf16.mxu0 %v926
    %1089 = vmatpush1.bf16.msra.mxu0 %v925
    %1090 = vmatprep.subr.bf16.mxu0 %v930
    %1091 = vmatpush1.bf16.msra.mxu0 %v929
    %1092 = vmatprep.subr.bf16.mxu0 0
    %1093 = vmatpush1.bf16.msra.mxu0 0
    %1094 = vmatprep.subr.bf16.mxu0 0
    %1095 = vmatpush1.bf16.msra.mxu0 0
    %1096 = vmatprep.subr.bf16.mxu0 0
    %1097 = vmatpush1.bf16.msra.mxu0 0
    %1098 = vmatprep.subr.bf16.mxu0 0
    %1099 = vmatpush1.bf16.msra.mxu0 0
    %1100 = vmatprep.subr.bf16.mxu0 0
    %1101 = vmatpush1.bf16.msra.mxu0 0
    %1102 = vmatprep.subr.bf16.mxu0 0
    %1103 = vmatpush1.bf16.msra.mxu0 0
    %1104 = vmatprep.subr.bf16.mxu0 0
    %1105 = vmatpush1.bf16.msra.mxu0 0
    %1106 = vmatprep.subr.bf16.mxu0 0
    %1107 = vmatpush1.bf16.msra.mxu0 0
    %1108 = vmatprep.mubr.bf16.mxu0 0
    %1109 = vmatmul.mubr.bf16.gmra.mrb[0].mxu0 %v1075
    %v1110 = vpop.f32.mrb[0].mxu0
    %v1111 = vadd.f32 0.0, %v1110
    %v1112 = vpop.f32.mrb[0].mxu0
    %v1113 = vadd.f32 0.0, %v1112
    %v1114 = vpop.f32.mrb[0].mxu0
    %v1115 = vpop.f32.mrb[0].mxu0
    %1116 = vdwg.mxu0
    %1117 = vmatprep.subr.bf16.mxu0 %v904
    %1118 = vmatpush1.bf16.msra.mxu0 %v903
    %1119 = vmatprep.subr.bf16.mxu0 %v908
    %1120 = vmatpush1.bf16.msra.mxu0 %v907
    %1121 = vmatprep.subr.bf16.mxu0 %v912
    %1122 = vmatpush1.bf16.msra.mxu0 %v911
    %1123 = vmatprep.subr.bf16.mxu0 %v916
    %1124 = vmatpush1.bf16.msra.mxu0 %v915
    %1125 = vmatprep.subr.bf16.mxu0 %v920
    %1126 = vmatpush1.bf16.msra.mxu0 %v919
    %1127 = vmatprep.subr.bf16.mxu0 %v924
    %1128 = vmatpush1.bf16.msra.mxu0 %v923
    %1129 = vmatprep.subr.bf16.mxu0 %v928
    %1130 = vmatpush1.bf16.msra.mxu0 %v927
    %1131 = vmatprep.subr.bf16.mxu0 %v932
    %1132 = vmatpush1.bf16.msra.mxu0 %v931
    %1133 = vmatprep.subr.bf16.mxu0 0
    %1134 = vmatpush1.bf16.msra.mxu0 0
    %1135 = vmatprep.subr.bf16.mxu0 0
    %1136 = vmatpush1.bf16.msra.mxu0 0
    %1137 = vmatprep.subr.bf16.mxu0 0
    %1138 = vmatpush1.bf16.msra.mxu0 0
    %1139 = vmatprep.subr.bf16.mxu0 0
    %1140 = vmatpush1.bf16.msra.mxu0 0
    %1141 = vmatprep.subr.bf16.mxu0 0
    %1142 = vmatpush1.bf16.msra.mxu0 0
    %1143 = vmatprep.subr.bf16.mxu0 0
    %1144 = vmatpush1.bf16.msra.mxu0 0
    %1145 = vmatprep.subr.bf16.mxu0 0
    %1146 = vmatpush1.bf16.msra.mxu0 0
    %1147 = vmatprep.subr.bf16.mxu0 0
    %1148 = vmatpush1.bf16.msra.mxu0 0
    %1149 = vmatprep.mubr.bf16.mxu0 0
    %1150 = vmatmul.mubr.bf16.gmra.mrb[0].mxu0 %v1075
    %v1151 = vpop.f32.mrb[0].mxu0
    %v1152 = vadd.f32 0.0, %v1151
    %v1153 = vpop.f32.mrb[0].mxu0
    %v1154 = vadd.f32 0.0, %v1153
    %v1155 = vpop.f32.mrb[0].mxu0
    %v1156 = vpop.f32.mrb[0].mxu0
    %1157 = vdwg.mxu0
    %v1158 = vadd.f32 %v732, %v1111
    %v1159 = vadd.f32 %v733, %v1113
    %v1160 = vadd.f32 %v734, %v1152
    %v1161 = vadd.f32 %v735, %v1154
    %v1162 = vxor.u32 %v1158, 2147483648
    %v1163 = vxor.u32 %v1159, 2147483648
    %v1164 = vxor.u32 %v1160, 2147483648
    %v1165 = vmul.f32 %v1162, 1.442695
    %v1166 = vpow.pop %v1165
    %v1167 = vmul.f32 %v1163, 1.442695
    %v1168 = vpow.pop %v1167
    %v1169 = vmul.f32 %v1164, 1.442695
    %v1170 = vpow.pop %v1169
    %v1171 = vadd.f32 %v1166, 1.0
    %v1172 = vadd.f32 %v1168, 1.0
    %v1173 = vadd.f32 %v1170, 1.0
    %v1174 = vrcp.pop %v1171
    %v1175 = vmul.f32 1.0, %v1174
    %v1176 = vrcp.pop %v1172
    %v1177 = vmul.f32 1.0, %v1176
    %v1178 = vrcp.pop %v1173
    %v1179 = vmul.f32 1.0, %v1178
    %v1180 = vtanh.pop %v1161
    %v1181 = vmul.f32 %v1177, %v1072
    %v1182 = vmul.f32 %v1175, %v1180
    %v1183 = vadd.f32 %v1181, %v1182
    %v1184 = vtanh.pop %v1183
    %v1185 = vmul.f32 %v1179, %v1184
    %v1186 = vpack.c.bf16 %v1185, %v1185
    %1187 = vmatprep.subr.bf16.mxu0 %v902
    %1188 = vmatpush1.bf16.msra.mxu0 %v901
    %1189 = vmatprep.subr.bf16.mxu0 %v906
    %1190 = vmatpush1.bf16.msra.mxu0 %v905
    %1191 = vmatprep.subr.bf16.mxu0 %v910
    %1192 = vmatpush1.bf16.msra.mxu0 %v909
    %1193 = vmatprep.subr.bf16.mxu0 %v914
    %1194 = vmatpush1.bf16.msra.mxu0 %v913
    %1195 = vmatprep.subr.bf16.mxu0 %v918
    %1196 = vmatpush1.bf16.msra.mxu0 %v917
    %1197 = vmatprep.subr.bf16.mxu0 %v922
    %1198 = vmatpush1.bf16.msra.mxu0 %v921
    %1199 = vmatprep.subr.bf16.mxu0 %v926
    %1200 = vmatpush1.bf16.msra.mxu0 %v925
    %1201 = vmatprep.subr.bf16.mxu0 %v930
    %1202 = vmatpush1.bf16.msra.mxu0 %v929
    %1203 = vmatprep.subr.bf16.mxu0 0
    %1204 = vmatpush1.bf16.msra.mxu0 0
    %1205 = vmatprep.subr.bf16.mxu0 0
    %1206 = vmatpush1.bf16.msra.mxu0 0
    %1207 = vmatprep.subr.bf16.mxu0 0
    %1208 = vmatpush1.bf16.msra.mxu0 0
    %1209 = vmatprep.subr.bf16.mxu0 0
    %1210 = vmatpush1.bf16.msra.mxu0 0
    %1211 = vmatprep.subr.bf16.mxu0 0
    %1212 = vmatpush1.bf16.msra.mxu0 0
    %1213 = vmatprep.subr.bf16.mxu0 0
    %1214 = vmatpush1.bf16.msra.mxu0 0
    %1215 = vmatprep.subr.bf16.mxu0 0
    %1216 = vmatpush1.bf16.msra.mxu0 0
    %1217 = vmatprep.subr.bf16.mxu0 0
    %1218 = vmatpush1.bf16.msra.mxu0 0
    %1219 = vmatprep.mubr.bf16.mxu0 0
    %1220 = vmatmul.mubr.bf16.gmra.mrb[0].mxu0 %v1186
    %v1221 = vpop.f32.mrb[0].mxu0
    %v1222 = vadd.f32 0.0, %v1221
    %v1223 = vpop.f32.mrb[0].mxu0
    %v1224 = vadd.f32 0.0, %v1223
    %v1225 = vpop.f32.mrb[0].mxu0
    %v1226 = vpop.f32.mrb[0].mxu0
    %1227 = vdwg.mxu0
    %1228 = vmatprep.subr.bf16.mxu0 %v904
    %1229 = vmatpush1.bf16.msra.mxu0 %v903
    %1230 = vmatprep.subr.bf16.mxu0 %v908
    %1231 = vmatpush1.bf16.msra.mxu0 %v907
    %1232 = vmatprep.subr.bf16.mxu0 %v912
    %1233 = vmatpush1.bf16.msra.mxu0 %v911
    %1234 = vmatprep.subr.bf16.mxu0 %v916
    %1235 = vmatpush1.bf16.msra.mxu0 %v915
    %1236 = vmatprep.subr.bf16.mxu0 %v920
    %1237 = vmatpush1.bf16.msra.mxu0 %v919
    %1238 = vmatprep.subr.bf16.mxu0 %v924
    %1239 = vmatpush1.bf16.msra.mxu0 %v923
    %1240 = vmatprep.subr.bf16.mxu0 %v928
    %1241 = vmatpush1.bf16.msra.mxu0 %v927
    %1242 = vmatprep.subr.bf16.mxu0 %v932
    %1243 = vmatpush1.bf16.msra.mxu0 %v931
    %1244 = vmatprep.subr.bf16.mxu0 0
    %1245 = vmatpush1.bf16.msra.mxu0 0
    %1246 = vmatprep.subr.bf16.mxu0 0
    %1247 = vmatpush1.bf16.msra.mxu0 0
    %1248 = vmatprep.subr.bf16.mxu0 0
    %1249 = vmatpush1.bf16.msra.mxu0 0
    %1250 = vmatprep.subr.bf16.mxu0 0
    %1251 = vmatpush1.bf16.msra.mxu0 0
    %1252 = vmatprep.subr.bf16.mxu0 0
    %1253 = vmatpush1.bf16.msra.mxu0 0
    %1254 = vmatprep.subr.bf16.mxu0 0
    %1255 = vmatpush1.bf16.msra.mxu0 0
    %1256 = vmatprep.subr.bf16.mxu0 0
    %1257 = vmatpush1.bf16.msra.mxu0 0
    %1258 = vmatprep.subr.bf16.mxu0 0
    %1259 = vmatpush1.bf16.msra.mxu0 0
    %1260 = vmatprep.mubr.bf16.mxu0 0
    %1261 = vmatmul.mubr.bf16.gmra.mrb[0].mxu0 %v1186
    %v1262 = vpop.f32.mrb[0].mxu0
    %v1263 = vadd.f32 0.0, %v1262
    %v1264 = vpop.f32.mrb[0].mxu0
    %v1265 = vadd.f32 0.0, %v1264
    %v1266 = vpop.f32.mrb[0].mxu0
    %v1267 = vpop.f32.mrb[0].mxu0
    %1268 = vdwg.mxu0
    %v1269 = vadd.f32 %v736, %v1222
    %v1270 = vadd.f32 %v737, %v1224
    %v1271 = vadd.f32 %v738, %v1263
    %v1272 = vadd.f32 %v739, %v1265
    %v1273 = vxor.u32 %v1269, 2147483648
    %v1274 = vxor.u32 %v1270, 2147483648
    %v1275 = vxor.u32 %v1271, 2147483648
    %v1276 = vmul.f32 %v1273, 1.442695
    %v1277 = vpow.pop %v1276
    %v1278 = vmul.f32 %v1274, 1.442695
    %v1279 = vpow.pop %v1278
    %v1280 = vmul.f32 %v1275, 1.442695
    %v1281 = vpow.pop %v1280
    %v1282 = vadd.f32 %v1277, 1.0
    %v1283 = vadd.f32 %v1279, 1.0
    %v1284 = vadd.f32 %v1281, 1.0
    %v1285 = vrcp.pop %v1282
    %v1286 = vmul.f32 1.0, %v1285
    %v1287 = vrcp.pop %v1283
    %v1288 = vmul.f32 1.0, %v1287
    %v1289 = vrcp.pop %v1284
    %v1290 = vmul.f32 1.0, %v1289
    %v1291 = vtanh.pop %v1272
    %v1292 = vmul.f32 %v1288, %v1183
    %v1293 = vmul.f32 %v1286, %v1291
    %v1294 = vadd.f32 %v1292, %v1293
    %v1295 = vtanh.pop %v1294
    %v1296 = vmul.f32 %v1290, %v1295
    %v1297 = vpack.c.bf16 %v1296, %v1296
    %1298 = vmatprep.subr.bf16.mxu0 %v902
    %1299 = vmatpush1.bf16.msra.mxu0 %v901
    %1300 = vmatprep.subr.bf16.mxu0 %v906
    %1301 = vmatpush1.bf16.msra.mxu0 %v905
    %1302 = vmatprep.subr.bf16.mxu0 %v910
    %1303 = vmatpush1.bf16.msra.mxu0 %v909
    %1304 = vmatprep.subr.bf16.mxu0 %v914
    %1305 = vmatpush1.bf16.msra.mxu0 %v913
    %1306 = vmatprep.subr.bf16.mxu0 %v918
    %1307 = vmatpush1.bf16.msra.mxu0 %v917
    %1308 = vmatprep.subr.bf16.mxu0 %v922
    %1309 = vmatpush1.bf16.msra.mxu0 %v921
    %1310 = vmatprep.subr.bf16.mxu0 %v926
    %1311 = vmatpush1.bf16.msra.mxu0 %v925
    %1312 = vmatprep.subr.bf16.mxu0 %v930
    %1313 = vmatpush1.bf16.msra.mxu0 %v929
    %1314 = vmatprep.subr.bf16.mxu0 0
    %1315 = vmatpush1.bf16.msra.mxu0 0
    %1316 = vmatprep.subr.bf16.mxu0 0
    %1317 = vmatpush1.bf16.msra.mxu0 0
    %1318 = vmatprep.subr.bf16.mxu0 0
    %1319 = vmatpush1.bf16.msra.mxu0 0
    %1320 = vmatprep.subr.bf16.mxu0 0
    %1321 = vmatpush1.bf16.msra.mxu0 0
    %1322 = vmatprep.subr.bf16.mxu0 0
    %1323 = vmatpush1.bf16.msra.mxu0 0
    %1324 = vmatprep.subr.bf16.mxu0 0
    %1325 = vmatpush1.bf16.msra.mxu0 0
    %1326 = vmatprep.subr.bf16.mxu0 0
    %1327 = vmatpush1.bf16.msra.mxu0 0
    %1328 = vmatprep.subr.bf16.mxu0 0
    %1329 = vmatpush1.bf16.msra.mxu0 0
    %1330 = vmatprep.mubr.bf16.mxu0 0
    %1331 = vmatmul.mubr.bf16.gmra.mrb[0].mxu0 %v1297
    %v1332 = vpop.f32.mrb[0].mxu0
    %v1333 = vadd.f32 0.0, %v1332
    %v1334 = vpop.f32.mrb[0].mxu0
    %v1335 = vadd.f32 0.0, %v1334
    %v1336 = vpop.f32.mrb[0].mxu0
    %v1337 = vpop.f32.mrb[0].mxu0
    %1338 = vdwg.mxu0
    %1339 = vmatprep.subr.bf16.mxu0 %v904
    %1340 = vmatpush1.bf16.msra.mxu0 %v903
    %1341 = vmatprep.subr.bf16.mxu0 %v908
    %1342 = vmatpush1.bf16.msra.mxu0 %v907
    %1343 = vmatprep.subr.bf16.mxu0 %v912
    %1344 = vmatpush1.bf16.msra.mxu0 %v911
    %1345 = vmatprep.subr.bf16.mxu0 %v916
    %1346 = vmatpush1.bf16.msra.mxu0 %v915
    %1347 = vmatprep.subr.bf16.mxu0 %v920
    %1348 = vmatpush1.bf16.msra.mxu0 %v919
    %1349 = vmatprep.subr.bf16.mxu0 %v924
    %1350 = vmatpush1.bf16.msra.mxu0 %v923
    %1351 = vmatprep.subr.bf16.mxu0 %v928
    %1352 = vmatpush1.bf16.msra.mxu0 %v927
    %1353 = vmatprep.subr.bf16.mxu0 %v932
    %1354 = vmatpush1.bf16.msra.mxu0 %v931
    %1355 = vmatprep.subr.bf16.mxu0 0
    %1356 = vmatpush1.bf16.msra.mxu0 0
    %1357 = vmatprep.subr.bf16.mxu0 0
    %1358 = vmatpush1.bf16.msra.mxu0 0
    %1359 = vmatprep.subr.bf16.mxu0 0
    %1360 = vmatpush1.bf16.msra.mxu0 0
    %1361 = vmatprep.subr.bf16.mxu0 0
    %1362 = vmatpush1.bf16.msra.mxu0 0
    %1363 = vmatprep.subr.bf16.mxu0 0
    %1364 = vmatpush1.bf16.msra.mxu0 0
    %1365 = vmatprep.subr.bf16.mxu0 0
    %1366 = vmatpush1.bf16.msra.mxu0 0
    %1367 = vmatprep.subr.bf16.mxu0 0
    %1368 = vmatpush1.bf16.msra.mxu0 0
    %1369 = vmatprep.subr.bf16.mxu0 0
    %1370 = vmatpush1.bf16.msra.mxu0 0
    %1371 = vmatprep.mubr.bf16.mxu0 0
    %1372 = vmatmul.mubr.bf16.gmra.mrb[0].mxu0 %v1297
    %v1373 = vpop.f32.mrb[0].mxu0
    %v1374 = vadd.f32 0.0, %v1373
    %v1375 = vpop.f32.mrb[0].mxu0
    %v1376 = vadd.f32 0.0, %v1375
    %v1377 = vpop.f32.mrb[0].mxu0
    %v1378 = vpop.f32.mrb[0].mxu0
    %1379 = vdwg.mxu0
    %v1380 = vadd.f32 %v740, %v1333
    %v1381 = vadd.f32 %v741, %v1335
    %v1382 = vadd.f32 %v742, %v1374
    %v1383 = vadd.f32 %v743, %v1376
    %v1384 = vxor.u32 %v1380, 2147483648
    %v1385 = vxor.u32 %v1381, 2147483648
    %v1386 = vxor.u32 %v1382, 2147483648
    %v1387 = vmul.f32 %v1384, 1.442695
    %v1388 = vpow.pop %v1387
    %v1389 = vmul.f32 %v1385, 1.442695
    %v1390 = vpow.pop %v1389
    %v1391 = vmul.f32 %v1386, 1.442695
    %v1392 = vpow.pop %v1391
    %v1393 = vadd.f32 %v1388, 1.0
    %v1394 = vadd.f32 %v1390, 1.0
    %v1395 = vadd.f32 %v1392, 1.0
    %v1396 = vrcp.pop %v1393
    %v1397 = vmul.f32 1.0, %v1396
    %v1398 = vrcp.pop %v1394
    %v1399 = vmul.f32 1.0, %v1398
    %v1400 = vrcp.pop %v1395
    %v1401 = vmul.f32 1.0, %v1400
    %v1402 = vtanh.pop %v1383
    %v1403 = vmul.f32 %v1399, %v1294
    %v1404 = vmul.f32 %v1397, %v1402
    %v1405 = vadd.f32 %v1403, %v1404
    %v1406 = vtanh.pop %v1405
    %v1407 = vmul.f32 %v1401, %v1406
    %v1408 = vpack.c.bf16 %v1407, %v1407
    %1409 = vmatprep.subr.bf16.mxu0 %v902
    %1410 = vmatpush1.bf16.msra.mxu0 %v901
    %1411 = vmatprep.subr.bf16.mxu0 %v906
    %1412 = vmatpush1.bf16.msra.mxu0 %v905
    %1413 = vmatprep.subr.bf16.mxu0 %v910
    %1414 = vmatpush1.bf16.msra.mxu0 %v909
    %1415 = vmatprep.subr.bf16.mxu0 %v914
    %1416 = vmatpush1.bf16.msra.mxu0 %v913
    %1417 = vmatprep.subr.bf16.mxu0 %v918
    %1418 = vmatpush1.bf16.msra.mxu0 %v917
    %1419 = vmatprep.subr.bf16.mxu0 %v922
    %1420 = vmatpush1.bf16.msra.mxu0 %v921
    %1421 = vmatprep.subr.bf16.mxu0 %v926
    %1422 = vmatpush1.bf16.msra.mxu0 %v925
    %1423 = vmatprep.subr.bf16.mxu0 %v930
    %1424 = vmatpush1.bf16.msra.mxu0 %v929
    %1425 = vmatprep.subr.bf16.mxu0 0
    %1426 = vmatpush1.bf16.msra.mxu0 0
    %1427 = vmatprep.subr.bf16.mxu0 0
    %1428 = vmatpush1.bf16.msra.mxu0 0
    %1429 = vmatprep.subr.bf16.mxu0 0
    %1430 = vmatpush1.bf16.msra.mxu0 0
    %1431 = vmatprep.subr.bf16.mxu0 0
    %1432 = vmatpush1.bf16.msra.mxu0 0
    %1433 = vmatprep.subr.bf16.mxu0 0
    %1434 = vmatpush1.bf16.msra.mxu0 0
    %1435 = vmatprep.subr.bf16.mxu0 0
    %1436 = vmatpush1.bf16.msra.mxu0 0
    %1437 = vmatprep.subr.bf16.mxu0 0
    %1438 = vmatpush1.bf16.msra.mxu0 0
    %1439 = vmatprep.subr.bf16.mxu0 0
    %1440 = vmatpush1.bf16.msra.mxu0 0
    %1441 = vmatprep.mubr.bf16.mxu0 0
    %1442 = vmatmul.mubr.bf16.gmra.mrb[0].mxu0 %v1408
    %v1443 = vpop.f32.mrb[0].mxu0
    %v1444 = vadd.f32 0.0, %v1443
    %v1445 = vpop.f32.mrb[0].mxu0
    %v1446 = vadd.f32 0.0, %v1445
    %v1447 = vpop.f32.mrb[0].mxu0
    %v1448 = vpop.f32.mrb[0].mxu0
    %1449 = vdwg.mxu0
    %1450 = vmatprep.subr.bf16.mxu0 %v904
    %1451 = vmatpush1.bf16.msra.mxu0 %v903
    %1452 = vmatprep.subr.bf16.mxu0 %v908
    %1453 = vmatpush1.bf16.msra.mxu0 %v907
    %1454 = vmatprep.subr.bf16.mxu0 %v912
    %1455 = vmatpush1.bf16.msra.mxu0 %v911
    %1456 = vmatprep.subr.bf16.mxu0 %v916
    %1457 = vmatpush1.bf16.msra.mxu0 %v915
    %1458 = vmatprep.subr.bf16.mxu0 %v920
    %1459 = vmatpush1.bf16.msra.mxu0 %v919
    %1460 = vmatprep.subr.bf16.mxu0 %v924
    %1461 = vmatpush1.bf16.msra.mxu0 %v923
    %1462 = vmatprep.subr.bf16.mxu0 %v928
    %1463 = vmatpush1.bf16.msra.mxu0 %v927
    %1464 = vmatprep.subr.bf16.mxu0 %v932
    %1465 = vmatpush1.bf16.msra.mxu0 %v931
    %1466 = vmatprep.subr.bf16.mxu0 0
    %1467 = vmatpush1.bf16.msra.mxu0 0
    %1468 = vmatprep.subr.bf16.mxu0 0
    %1469 = vmatpush1.bf16.msra.mxu0 0
    %1470 = vmatprep.subr.bf16.mxu0 0
    %1471 = vmatpush1.bf16.msra.mxu0 0
    %1472 = vmatprep.subr.bf16.mxu0 0
    %1473 = vmatpush1.bf16.msra.mxu0 0
    %1474 = vmatprep.subr.bf16.mxu0 0
    %1475 = vmatpush1.bf16.msra.mxu0 0
    %1476 = vmatprep.subr.bf16.mxu0 0
    %1477 = vmatpush1.bf16.msra.mxu0 0
    %1478 = vmatprep.subr.bf16.mxu0 0
    %1479 = vmatpush1.bf16.msra.mxu0 0
    %1480 = vmatprep.subr.bf16.mxu0 0
    %1481 = vmatpush1.bf16.msra.mxu0 0
    %1482 = vmatprep.mubr.bf16.mxu0 0
    %1483 = vmatmul.mubr.bf16.gmra.mrb[0].mxu0 %v1408
    %v1484 = vpop.f32.mrb[0].mxu0
    %v1485 = vadd.f32 0.0, %v1484
    %v1486 = vpop.f32.mrb[0].mxu0
    %v1487 = vadd.f32 0.0, %v1486
    %v1488 = vpop.f32.mrb[0].mxu0
    %v1489 = vpop.f32.mrb[0].mxu0
    %1490 = vdwg.mxu0
    %v1491 = vadd.f32 %v744, %v1444
    %v1492 = vadd.f32 %v745, %v1446
    %v1493 = vadd.f32 %v746, %v1485
    %v1494 = vadd.f32 %v747, %v1487
    %v1495 = vxor.u32 %v1491, 2147483648
    %v1496 = vxor.u32 %v1492, 2147483648
    %v1497 = vxor.u32 %v1493, 2147483648
    %v1498 = vmul.f32 %v1495, 1.442695
    %v1499 = vpow.pop %v1498
    %v1500 = vmul.f32 %v1496, 1.442695
    %v1501 = vpow.pop %v1500
    %v1502 = vmul.f32 %v1497, 1.442695
    %v1503 = vpow.pop %v1502
    %v1504 = vadd.f32 %v1499, 1.0
    %v1505 = vadd.f32 %v1501, 1.0
    %v1506 = vadd.f32 %v1503, 1.0
    %v1507 = vrcp.pop %v1504
    %v1508 = vmul.f32 1.0, %v1507
    %v1509 = vrcp.pop %v1505
    %v1510 = vmul.f32 1.0, %v1509
    %v1511 = vrcp.pop %v1506
    %v1512 = vmul.f32 1.0, %v1511
    %v1513 = vtanh.pop %v1494
    %v1514 = vmul.f32 %v1510, %v1405
    %v1515 = vmul.f32 %v1508, %v1513
    %v1516 = vadd.f32 %v1514, %v1515
    %v1517 = vtanh.pop %v1516
    %v1518 = vmul.f32 %v1512, %v1517
    %v1519 = vpack.c.bf16 %v1518, %v1518
    %1520 = vmatprep.subr.bf16.mxu0 %v902
    %1521 = vmatpush1.bf16.msra.mxu0 %v901
    %1522 = vmatprep.subr.bf16.mxu0 %v906
    %1523 = vmatpush1.bf16.msra.mxu0 %v905
    %1524 = vmatprep.subr.bf16.mxu0 %v910
    %1525 = vmatpush1.bf16.msra.mxu0 %v909
    %1526 = vmatprep.subr.bf16.mxu0 %v914
    %1527 = vmatpush1.bf16.msra.mxu0 %v913
    %1528 = vmatprep.subr.bf16.mxu0 %v918
    %1529 = vmatpush1.bf16.msra.mxu0 %v917
    %1530 = vmatprep.subr.bf16.mxu0 %v922
    %1531 = vmatpush1.bf16.msra.mxu0 %v921
    %1532 = vmatprep.subr.bf16.mxu0 %v926
    %1533 = vmatpush1.bf16.msra.mxu0 %v925
    %1534 = vmatprep.subr.bf16.mxu0 %v930
    %1535 = vmatpush1.bf16.msra.mxu0 %v929
    %1536 = vmatprep.subr.bf16.mxu0 0
    %1537 = vmatpush1.bf16.msra.mxu0 0
    %1538 = vmatprep.subr.bf16.mxu0 0
    %1539 = vmatpush1.bf16.msra.mxu0 0
    %1540 = vmatprep.subr.bf16.mxu0 0
    %1541 = vmatpush1.bf16.msra.mxu0 0
    %1542 = vmatprep.subr.bf16.mxu0 0
    %1543 = vmatpush1.bf16.msra.mxu0 0
    %1544 = vmatprep.subr.bf16.mxu0 0
    %1545 = vmatpush1.bf16.msra.mxu0 0
    %1546 = vmatprep.subr.bf16.mxu0 0
    %1547 = vmatpush1.bf16.msra.mxu0 0
    %1548 = vmatprep.subr.bf16.mxu0 0
    %1549 = vmatpush1.bf16.msra.mxu0 0
    %1550 = vmatprep.subr.bf16.mxu0 0
    %1551 = vmatpush1.bf16.msra.mxu0 0
    %1552 = vmatprep.mubr.bf16.mxu0 0
    %1553 = vmatmul.mubr.bf16.gmra.mrb[0].mxu0 %v1519
    %v1554 = vpop.f32.mrb[0].mxu0
    %v1555 = vadd.f32 0.0, %v1554
    %v1556 = vpop.f32.mrb[0].mxu0
    %v1557 = vadd.f32 0.0, %v1556
    %v1558 = vpop.f32.mrb[0].mxu0
    %v1559 = vpop.f32.mrb[0].mxu0
    %1560 = vdwg.mxu0
    %1561 = vmatprep.subr.bf16.mxu0 %v904
    %1562 = vmatpush1.bf16.msra.mxu0 %v903
    %1563 = vmatprep.subr.bf16.mxu0 %v908
    %1564 = vmatpush1.bf16.msra.mxu0 %v907
    %1565 = vmatprep.subr.bf16.mxu0 %v912
    %1566 = vmatpush1.bf16.msra.mxu0 %v911
    %1567 = vmatprep.subr.bf16.mxu0 %v916
    %1568 = vmatpush1.bf16.msra.mxu0 %v915
    %1569 = vmatprep.subr.bf16.mxu0 %v920
    %1570 = vmatpush1.bf16.msra.mxu0 %v919
    %1571 = vmatprep.subr.bf16.mxu0 %v924
    %1572 = vmatpush1.bf16.msra.mxu0 %v923
    %1573 = vmatprep.subr.bf16.mxu0 %v928
    %1574 = vmatpush1.bf16.msra.mxu0 %v927
    %1575 = vmatprep.subr.bf16.mxu0 %v932
    %1576 = vmatpush1.bf16.msra.mxu0 %v931
    %1577 = vmatprep.subr.bf16.mxu0 0
    %1578 = vmatpush1.bf16.msra.mxu0 0
    %1579 = vmatprep.subr.bf16.mxu0 0
    %1580 = vmatpush1.bf16.msra.mxu0 0
    %1581 = vmatprep.subr.bf16.mxu0 0
    %1582 = vmatpush1.bf16.msra.mxu0 0
    %1583 = vmatprep.subr.bf16.mxu0 0
    %1584 = vmatpush1.bf16.msra.mxu0 0
    %1585 = vmatprep.subr.bf16.mxu0 0
    %1586 = vmatpush1.bf16.msra.mxu0 0
    %1587 = vmatprep.subr.bf16.mxu0 0
    %1588 = vmatpush1.bf16.msra.mxu0 0
    %1589 = vmatprep.subr.bf16.mxu0 0
    %1590 = vmatpush1.bf16.msra.mxu0 0
    %1591 = vmatprep.subr.bf16.mxu0 0
    %1592 = vmatpush1.bf16.msra.mxu0 0
    %1593 = vmatprep.mubr.bf16.mxu0 0
    %1594 = vmatmul.mubr.bf16.gmra.mrb[0].mxu0 %v1519
    %v1595 = vpop.f32.mrb[0].mxu0
    %v1596 = vadd.f32 0.0, %v1595
    %v1597 = vpop.f32.mrb[0].mxu0
    %v1598 = vadd.f32 0.0, %v1597
    %v1599 = vpop.f32.mrb[0].mxu0
    %v1600 = vpop.f32.mrb[0].mxu0
    %1601 = vdwg.mxu0
    %v1602 = vadd.f32 %v748, %v1555
    %v1603 = vadd.f32 %v749, %v1557
    %v1604 = vadd.f32 %v750, %v1596
    %v1605 = vadd.f32 %v751, %v1598
    %v1606 = vxor.u32 %v1602, 2147483648
    %v1607 = vxor.u32 %v1603, 2147483648
    %v1608 = vxor.u32 %v1604, 2147483648
    %v1609 = vmul.f32 %v1606, 1.442695
    %v1610 = vpow.pop %v1609
    %v1611 = vmul.f32 %v1607, 1.442695
    %v1612 = vpow.pop %v1611
    %v1613 = vmul.f32 %v1608, 1.442695
    %v1614 = vpow.pop %v1613
    %v1615 = vadd.f32 %v1610, 1.0
    %v1616 = vadd.f32 %v1612, 1.0
    %v1617 = vadd.f32 %v1614, 1.0
    %v1618 = vrcp.pop %v1615
    %v1619 = vmul.f32 1.0, %v1618
    %v1620 = vrcp.pop %v1616
    %v1621 = vmul.f32 1.0, %v1620
    %v1622 = vrcp.pop %v1617
    %v1623 = vmul.f32 1.0, %v1622
    %v1624 = vtanh.pop %v1605
    %v1625 = vmul.f32 %v1621, %v1516
    %v1626 = vmul.f32 %v1619, %v1624
    %v1627 = vadd.f32 %v1625, %v1626
    %v1628 = vtanh.pop %v1627
    %v1629 = vmul.f32 %v1623, %v1628
    %v1630 = vpack.c.bf16 %v1629, %v1629
    %1631 = vmatprep.subr.bf16.mxu0 %v902
    %1632 = vmatpush1.bf16.msra.mxu0 %v901
    %1633 = vmatprep.subr.bf16.mxu0 %v906
    %1634 = vmatpush1.bf16.msra.mxu0 %v905
    %1635 = vmatprep.subr.bf16.mxu0 %v910
    %1636 = vmatpush1.bf16.msra.mxu0 %v909
    %1637 = vmatprep.subr.bf16.mxu0 %v914
    %1638 = vmatpush1.bf16.msra.mxu0 %v913
    %1639 = vmatprep.subr.bf16.mxu0 %v918
    %1640 = vmatpush1.bf16.msra.mxu0 %v917
    %1641 = vmatprep.subr.bf16.mxu0 %v922
    %1642 = vmatpush1.bf16.msra.mxu0 %v921
    %1643 = vmatprep.subr.bf16.mxu0 %v926
    %1644 = vmatpush1.bf16.msra.mxu0 %v925
    %1645 = vmatprep.subr.bf16.mxu0 %v930
    %1646 = vmatpush1.bf16.msra.mxu0 %v929
    %1647 = vmatprep.subr.bf16.mxu0 0
    %1648 = vmatpush1.bf16.msra.mxu0 0
    %1649 = vmatprep.subr.bf16.mxu0 0
    %1650 = vmatpush1.bf16.msra.mxu0 0
    %1651 = vmatprep.subr.bf16.mxu0 0
    %1652 = vmatpush1.bf16.msra.mxu0 0
    %1653 = vmatprep.subr.bf16.mxu0 0
    %1654 = vmatpush1.bf16.msra.mxu0 0
    %1655 = vmatprep.subr.bf16.mxu0 0
    %1656 = vmatpush1.bf16.msra.mxu0 0
    %1657 = vmatprep.subr.bf16.mxu0 0
    %1658 = vmatpush1.bf16.msra.mxu0 0
    %1659 = vmatprep.subr.bf16.mxu0 0
    %1660 = vmatpush1.bf16.msra.mxu0 0
    %1661 = vmatprep.subr.bf16.mxu0 0
    %1662 = vmatpush1.bf16.msra.mxu0 0
    %1663 = vmatprep.mubr.bf16.mxu0 0
    %1664 = vmatmul.mubr.bf16.gmra.mrb[0].mxu0 %v1630
    %v1665 = vpop.f32.mrb[0].mxu0
    %v1666 = vadd.f32 0.0, %v1665
    %v1667 = vpop.f32.mrb[0].mxu0
    %v1668 = vadd.f32 0.0, %v1667
    %v1669 = vpop.f32.mrb[0].mxu0
    %v1670 = vpop.f32.mrb[0].mxu0
    %1671 = vdwg.mxu0
    %1672 = vmatprep.subr.bf16.mxu0 %v904
    %1673 = vmatpush1.bf16.msra.mxu0 %v903
    %1674 = vmatprep.subr.bf16.mxu0 %v908
    %1675 = vmatpush1.bf16.msra.mxu0 %v907
    %1676 = vmatprep.subr.bf16.mxu0 %v912
    %1677 = vmatpush1.bf16.msra.mxu0 %v911
    %1678 = vmatprep.subr.bf16.mxu0 %v916
    %1679 = vmatpush1.bf16.msra.mxu0 %v915
    %1680 = vmatprep.subr.bf16.mxu0 %v920
    %1681 = vmatpush1.bf16.msra.mxu0 %v919
    %1682 = vmatprep.subr.bf16.mxu0 %v924
    %1683 = vmatpush1.bf16.msra.mxu0 %v923
    %1684 = vmatprep.subr.bf16.mxu0 %v928
    %1685 = vmatpush1.bf16.msra.mxu0 %v927
    %1686 = vmatprep.subr.bf16.mxu0 %v932
    %1687 = vmatpush1.bf16.msra.mxu0 %v931
    %1688 = vmatprep.subr.bf16.mxu0 0
    %1689 = vmatpush1.bf16.msra.mxu0 0
    %1690 = vmatprep.subr.bf16.mxu0 0
    %1691 = vmatpush1.bf16.msra.mxu0 0
    %1692 = vmatprep.subr.bf16.mxu0 0
    %1693 = vmatpush1.bf16.msra.mxu0 0
    %1694 = vmatprep.subr.bf16.mxu0 0
    %1695 = vmatpush1.bf16.msra.mxu0 0
    %1696 = vmatprep.subr.bf16.mxu0 0
    %1697 = vmatpush1.bf16.msra.mxu0 0
    %1698 = vmatprep.subr.bf16.mxu0 0
    %1699 = vmatpush1.bf16.msra.mxu0 0
    %1700 = vmatprep.subr.bf16.mxu0 0
    %1701 = vmatpush1.bf16.msra.mxu0 0
    %1702 = vmatprep.subr.bf16.mxu0 0
    %1703 = vmatpush1.bf16.msra.mxu0 0
    %1704 = vmatprep.mubr.bf16.mxu0 0
    %1705 = vmatmul.mubr.bf16.gmra.mrb[0].mxu0 %v1630
    %v1706 = vpop.f32.mrb[0].mxu0
    %v1707 = vadd.f32 0.0, %v1706
    %v1708 = vpop.f32.mrb[0].mxu0
    %v1709 = vadd.f32 0.0, %v1708
    %v1710 = vpop.f32.mrb[0].mxu0
    %v1711 = vpop.f32.mrb[0].mxu0
    %1712 = vdwg.mxu0
    %v1713 = vadd.f32 %v752, %v1666
    %v1714 = vadd.f32 %v753, %v1668
    %v1715 = vadd.f32 %v754, %v1707
    %v1716 = vadd.f32 %v755, %v1709
    %v1717 = vxor.u32 %v1713, 2147483648
    %v1718 = vxor.u32 %v1714, 2147483648
    %v1719 = vxor.u32 %v1715, 2147483648
    %v1720 = vmul.f32 %v1717, 1.442695
    %v1721 = vpow.pop %v1720
    %v1722 = vmul.f32 %v1718, 1.442695
    %v1723 = vpow.pop %v1722
    %v1724 = vmul.f32 %v1719, 1.442695
    %v1725 = vpow.pop %v1724
    %v1726 = vadd.f32 %v1721, 1.0
    %v1727 = vadd.f32 %v1723, 1.0
    %v1728 = vadd.f32 %v1725, 1.0
    %v1729 = vrcp.pop %v1726
    %v1730 = vmul.f32 1.0, %v1729
    %v1731 = vrcp.pop %v1727
    %v1732 = vmul.f32 1.0, %v1731
    %v1733 = vrcp.pop %v1728
    %v1734 = vmul.f32 1.0, %v1733
    %v1735 = vtanh.pop %v1716
    %v1736 = vmul.f32 %v1732, %v1627
    %v1737 = vmul.f32 %v1730, %v1735
    %v1738 = vadd.f32 %v1736, %v1737
    %v1739 = vtanh.pop %v1738
    %v1740 = vmul.f32 %v1734, %v1739
    %v1741 = vld [vmem:[%s6] sm:$0xff]
    %v1742 = vld [vmem:[%s6 + $0x8] sm:$0xff]
    %v1743 = vld [vmem:[%s6 + $0x10] sm:$0xff]
    %v1744 = vld [vmem:[%s6 + $0x18] sm:$0xff]
    %v1745 = vld [vmem:[%s6 + $0x20] sm:$0xff]
    %v1746 = vld [vmem:[%s6 + $0x28] sm:$0xff]
    %v1747 = vld [vmem:[%s6 + $0x30] sm:$0xff]
    %v1748 = vld [vmem:[%s6 + $0x38] sm:$0xff]
    %v1749 = vld [vmem:[%s6 + $0x40] sm:$0xff]
    %v1750 = vld [vmem:[%s6 + $0x48] sm:$0xff]
    %v1751 = vld [vmem:[%s6 + $0x50] sm:$0xff]
    %v1752 = vld [vmem:[%s6 + $0x58] sm:$0xff]
    %v1753 = vld [vmem:[%s6 + $0x60] sm:$0xff]
    %v1754 = vld [vmem:[%s6 + $0x68] sm:$0xff]
    %v1755 = vld [vmem:[%s6 + $0x70] sm:$0xff]
    %v1756 = vld [vmem:[%s6 + $0x78] sm:$0xff]
    %v1757 = vld [vmem:[#allocation4] sm:$0x1]
    %v1759 = vlaneseq
    %v1760 = vshrl.u32 %v1759, 7
    %v1761 = vsub.s32 0, %v1760
    %v1762 = vrot.slane %v1757, %v1761
    %1764 = vmatprep.subr.mxu0 0.0
    %1765 = vmatpush1.msra.mxu0 %v1741
    %1766 = vmatprep.subr.mxu0 0.0
    %1767 = vmatpush1.msra.mxu0 %v1742
    %1768 = vmatprep.subr.mxu0 0.0
    %1769 = vmatpush1.msra.mxu0 %v1743
    %1770 = vmatprep.subr.mxu0 0.0
    %1771 = vmatpush1.msra.mxu0 %v1744
    %1772 = vmatprep.subr.mxu0 0.0
    %1773 = vmatpush1.msra.mxu0 %v1745
    %1774 = vmatprep.subr.mxu0 0.0
    %1775 = vmatpush1.msra.mxu0 %v1746
    %1776 = vmatprep.subr.mxu0 0.0
    %1777 = vmatpush1.msra.mxu0 %v1747
    %1778 = vmatprep.subr.mxu0 0.0
    %1779 = vmatpush1.msra.mxu0 %v1748
    %1780 = vmatprep.subr.mxu0 0.0
    %1781 = vmatpush1.msra.mxu0 %v1749
    %1782 = vmatprep.subr.mxu0 0.0
    %1783 = vmatpush1.msra.mxu0 %v1750
    %1784 = vmatprep.subr.mxu0 0.0
    %1785 = vmatpush1.msra.mxu0 %v1751
    %1786 = vmatprep.subr.mxu0 0.0
    %1787 = vmatpush1.msra.mxu0 %v1752
    %1788 = vmatprep.subr.mxu0 0.0
    %1789 = vmatpush1.msra.mxu0 %v1753
    %1790 = vmatprep.subr.mxu0 0.0
    %1791 = vmatpush1.msra.mxu0 %v1754
    %1792 = vmatprep.subr.mxu0 0.0
    %1793 = vmatpush1.msra.mxu0 %v1755
    %1794 = vmatprep.subr.mxu0 0.0
    %1795 = vmatpush1.msra.mxu0 %v1756
    %1796 = vmatprep.subr.mxu0 0.0
    %1797 = vmatpush1.msra.mxu0 0.0
    %1798 = vmatprep.subr.mxu0 0.0
    %1799 = vmatpush1.msra.mxu0 0.0
    %1800 = vmatprep.subr.mxu0 0.0
    %1801 = vmatpush1.msra.mxu0 0.0
    %1802 = vmatprep.subr.mxu0 0.0
    %1803 = vmatpush1.msra.mxu0 0.0
    %1804 = vmatprep.subr.mxu0 0.0
    %1805 = vmatpush1.msra.mxu0 0.0
    %1806 = vmatprep.subr.mxu0 0.0
    %1807 = vmatpush1.msra.mxu0 0.0
    %1808 = vmatprep.subr.mxu0 0.0
    %1809 = vmatpush1.msra.mxu0 0.0
    %1810 = vmatprep.subr.mxu0 0.0
    %1811 = vmatpush1.msra.mxu0 0.0
    %1812 = vmatprep.subr.mxu0 0.0
    %1813 = vmatpush1.msra.mxu0 0.0
    %1814 = vmatprep.subr.mxu0 0.0
    %1815 = vmatpush1.msra.mxu0 0.0
    %1816 = vmatprep.subr.mxu0 0.0
    %1817 = vmatpush1.msra.mxu0 0.0
    %1818 = vmatprep.subr.mxu0 0.0
    %1819 = vmatpush1.msra.mxu0 0.0
    %1820 = vmatprep.subr.mxu0 0.0
    %1821 = vmatpush1.msra.mxu0 0.0
    %1822 = vmatprep.subr.mxu0 0.0
    %1823 = vmatpush1.msra.mxu0 0.0
    %1824 = vmatprep.subr.mxu0 0.0
    %1825 = vmatpush1.msra.mxu0 0.0
    %1826 = vmatprep.subr.mxu0 0.0
    %1827 = vmatpush1.msra.mxu0 0.0
    %1828 = vmatprep.mubr.f32.mxu0 0.0
    %1829 = vmatmul.mubr.f32.gmra.mrb[0].mxu0 %v1740
    %v1830 = vpop.f32.mrb[0].mxu0
    %v1831 = vadd.f32 %v1762, %v1830
    %v1832 = vpop.f32.mrb[0].mxu0
    %1833 = vdwg.mxu0
    %v1834 = vld [vmem:[%s8] sm:$0xff]
    %v1835 = vld [vmem:[%s8 + $0x8] sm:$0xff]
    %v1836 = vld [vmem:[%s8 + $0x10] sm:$0xff]
    %v1837 = vld [vmem:[%s8 + $0x18] sm:$0xff]
    %v1838 = vld [vmem:[%s8 + $0x20] sm:$0xff]
    %v1839 = vld [vmem:[%s8 + $0x28] sm:$0xff]
    %v1840 = vld [vmem:[%s8 + $0x30] sm:$0xff]
    %v1841 = vld [vmem:[%s8 + $0x38] sm:$0xff]
    %v1842 = vld [vmem:[%s9] sm:$0x1]
    %v1844 = vlaneseq
    %v1845 = vshrl.u32 %v1844, 7
    %v1846 = vsub.s32 0, %v1845
    %v1847 = vrot.slane %v1842, %v1846
    %vm1849 = vcmask 523264
    %v1851 = vsel %vm1849, %v1831, 0
    %1853 = vmatprep.subr.mxu0 0.0
    %1854 = vmatpush1.msra.mxu0 %v1834
    %1855 = vmatprep.subr.mxu0 0.0
    %1856 = vmatpush1.msra.mxu0 %v1835
    %1857 = vmatprep.subr.mxu0 0.0
    %1858 = vmatpush1.msra.mxu0 %v1836
    %1859 = vmatprep.subr.mxu0 0.0
    %1860 = vmatpush1.msra.mxu0 %v1837
    %1861 = vmatprep.subr.mxu0 0.0
    %1862 = vmatpush1.msra.mxu0 %v1838
    %1863 = vmatprep.subr.mxu0 0.0
    %1864 = vmatpush1.msra.mxu0 %v1839
    %1865 = vmatprep.subr.mxu0 0.0
    %1866 = vmatpush1.msra.mxu0 %v1840
    %1867 = vmatprep.subr.mxu0 0.0
    %1868 = vmatpush1.msra.mxu0 %v1841
    %1869 = vmatprep.subr.mxu0 0.0
    %1870 = vmatpush1.msra.mxu0 0.0
    %1871 = vmatprep.subr.mxu0 0.0
    %1872 = vmatpush1.msra.mxu0 0.0
    %1873 = vmatprep.subr.mxu0 0.0
    %1874 = vmatpush1.msra.mxu0 0.0
    %1875 = vmatprep.subr.mxu0 0.0
    %1876 = vmatpush1.msra.mxu0 0.0
    %1877 = vmatprep.subr.mxu0 0.0
    %1878 = vmatpush1.msra.mxu0 0.0
    %1879 = vmatprep.subr.mxu0 0.0
    %1880 = vmatpush1.msra.mxu0 0.0
    %1881 = vmatprep.subr.mxu0 0.0
    %1882 = vmatpush1.msra.mxu0 0.0
    %1883 = vmatprep.subr.mxu0 0.0
    %1884 = vmatpush1.msra.mxu0 0.0
    %1885 = vmatprep.subr.mxu0 0.0
    %1886 = vmatpush1.msra.mxu0 0.0
    %1887 = vmatprep.subr.mxu0 0.0
    %1888 = vmatpush1.msra.mxu0 0.0
    %1889 = vmatprep.subr.mxu0 0.0
    %1890 = vmatpush1.msra.mxu0 0.0
    %1891 = vmatprep.subr.mxu0 0.0
    %1892 = vmatpush1.msra.mxu0 0.0
    %1893 = vmatprep.subr.mxu0 0.0
    %1894 = vmatpush1.msra.mxu0 0.0
    %1895 = vmatprep.subr.mxu0 0.0
    %1896 = vmatpush1.msra.mxu0 0.0
    %1897 = vmatprep.subr.mxu0 0.0
    %1898 = vmatpush1.msra.mxu0 0.0
    %1899 = vmatprep.subr.mxu0 0.0
    %1900 = vmatpush1.msra.mxu0 0.0
    %1901 = vmatprep.subr.mxu0 0.0
    %1902 = vmatpush1.msra.mxu0 0.0
    %1903 = vmatprep.subr.mxu0 0.0
    %1904 = vmatpush1.msra.mxu0 0.0
    %1905 = vmatprep.subr.mxu0 0.0
    %1906 = vmatpush1.msra.mxu0 0.0
    %1907 = vmatprep.subr.mxu0 0.0
    %1908 = vmatpush1.msra.mxu0 0.0
    %1909 = vmatprep.subr.mxu0 0.0
    %1910 = vmatpush1.msra.mxu0 0.0
    %1911 = vmatprep.subr.mxu0 0.0
    %1912 = vmatpush1.msra.mxu0 0.0
    %1913 = vmatprep.subr.mxu0 0.0
    %1914 = vmatpush1.msra.mxu0 0.0
    %1915 = vmatprep.subr.mxu0 0.0
    %1916 = vmatpush1.msra.mxu0 0.0
    %1917 = vmatprep.mubr.f32.mxu0 0.0
    %1918 = vmatmul.mubr.f32.gmra.mrb[0].mxu0 %v1851
    %v1919 = vpop.f32.mrb[0].mxu0
    %v1920 = vadd.f32 %v1847, %v1919
    %v1921 = vpop.f32.mrb[0].mxu0
    %1922 = vdwg.mxu0
    %v1923 = vxor.u32 %v1920, 2147483648
    %v1924 = vmul.f32 %v1923, 1.442695
    %v1925 = vpow.pop %v1924
    %v1926 = vadd.f32 %v1925, 1.0
    %v1927 = vrcp.pop %v1926
    %v1928 = vmul.f32 1.0, %v1927
    %v1929 = vmul.f32 %v1831, %v1928
    %v1930 = vld [vmem:[%s10] sm:$0xff]
    %v1931 = vld [vmem:[%s10 + $0x8] sm:$0xff]
    %v1932 = vld [vmem:[%s10 + $0x10] sm:$0xff]
    %v1933 = vld [vmem:[%s10 + $0x18] sm:$0xff]
    %v1934 = vld [vmem:[%s10 + $0x20] sm:$0xff]
    %v1935 = vld [vmem:[%s10 + $0x28] sm:$0xff]
    %v1936 = vld [vmem:[%s10 + $0x30] sm:$0xff]
    %v1937 = vld [vmem:[%s10 + $0x38] sm:$0xff]
    %v1938 = vld [vmem:[#allocation6] sm:$0x1]
    %v1940 = vlaneseq
    %v1941 = vshrl.u32 %v1940, 7
    %v1942 = vsub.s32 0, %v1941
    %v1943 = vrot.slane %v1938, %v1942
    %v1946 = vsel %vm1849, %v1929, 0
    %1948 = vmatprep.subr.mxu0 0.0
    %1949 = vmatpush1.msra.mxu0 %v1930
    %1950 = vmatprep.subr.mxu0 0.0
    %1951 = vmatpush1.msra.mxu0 %v1931
    %1952 = vmatprep.subr.mxu0 0.0
    %1953 = vmatpush1.msra.mxu0 %v1932
    %1954 = vmatprep.subr.mxu0 0.0
    %1955 = vmatpush1.msra.mxu0 %v1933
    %1956 = vmatprep.subr.mxu0 0.0
    %1957 = vmatpush1.msra.mxu0 %v1934
    %1958 = vmatprep.subr.mxu0 0.0
    %1959 = vmatpush1.msra.mxu0 %v1935
    %1960 = vmatprep.subr.mxu0 0.0
    %1961 = vmatpush1.msra.mxu0 %v1936
    %1962 = vmatprep.subr.mxu0 0.0
    %1963 = vmatpush1.msra.mxu0 %v1937
    %1964 = vmatprep.subr.mxu0 0.0
    %1965 = vmatpush1.msra.mxu0 0.0
    %1966 = vmatprep.subr.mxu0 0.0
    %1967 = vmatpush1.msra.mxu0 0.0
    %1968 = vmatprep.subr.mxu0 0.0
    %1969 = vmatpush1.msra.mxu0 0.0
    %1970 = vmatprep.subr.mxu0 0.0
    %1971 = vmatpush1.msra.mxu0 0.0
    %1972 = vmatprep.subr.mxu0 0.0
    %1973 = vmatpush1.msra.mxu0 0.0
    %1974 = vmatprep.subr.mxu0 0.0
    %1975 = vmatpush1.msra.mxu0 0.0
    %1976 = vmatprep.subr.mxu0 0.0
    %1977 = vmatpush1.msra.mxu0 0.0
    %1978 = vmatprep.subr.mxu0 0.0
    %1979 = vmatpush1.msra.mxu0 0.0
    %1980 = vmatprep.subr.mxu0 0.0
    %1981 = vmatpush1.msra.mxu0 0.0
    %1982 = vmatprep.subr.mxu0 0.0
    %1983 = vmatpush1.msra.mxu0 0.0
    %1984 = vmatprep.subr.mxu0 0.0
    %1985 = vmatpush1.msra.mxu0 0.0
    %1986 = vmatprep.subr.mxu0 0.0
    %1987 = vmatpush1.msra.mxu0 0.0
    %1988 = vmatprep.subr.mxu0 0.0
    %1989 = vmatpush1.msra.mxu0 0.0
    %1990 = vmatprep.subr.mxu0 0.0
    %1991 = vmatpush1.msra.mxu0 0.0
    %1992 = vmatprep.subr.mxu0 0.0
    %1993 = vmatpush1.msra.mxu0 0.0
    %1994 = vmatprep.subr.mxu0 0.0
    %1995 = vmatpush1.msra.mxu0 0.0
    %1996 = vmatprep.subr.mxu0 0.0
    %1997 = vmatpush1.msra.mxu0 0.0
    %1998 = vmatprep.subr.mxu0 0.0
    %1999 = vmatpush1.msra.mxu0 0.0
    %2000 = vmatprep.subr.mxu0 0.0
    %2001 = vmatpush1.msra.mxu0 0.0
    %2002 = vmatprep.subr.mxu0 0.0
    %2003 = vmatpush1.msra.mxu0 0.0
    %2004 = vmatprep.subr.mxu0 0.0
    %2005 = vmatpush1.msra.mxu0 0.0
    %2006 = vmatprep.subr.mxu0 0.0
    %2007 = vmatpush1.msra.mxu0 0.0
    %2008 = vmatprep.subr.mxu0 0.0
    %2009 = vmatpush1.msra.mxu0 0.0
    %2010 = vmatprep.subr.mxu0 0.0
    %2011 = vmatpush1.msra.mxu0 0.0
    %2012 = vmatprep.mubr.f32.mxu0 0.0
    %2013 = vmatmul.mubr.f32.gmra.mrb[0].mxu0 %v1946
    %v2014 = vpop.f32.mrb[0].mxu0
    %v2015 = vadd.f32 %v1943, %v2014
    %v2016 = vpop.f32.mrb[0].mxu0
    %2017 = vdwg.mxu0
    %v2018 = vmax.f32 %v2015, 0.0
    %v2019 = vld [vmem:[#allocation7] sm:$0xff]
    %v2020 = vld [vmem:[#allocation7 + $0x8] sm:$0xff]
    %v2021 = vld [vmem:[#allocation7 + $0x10] sm:$0xff]
    %v2022 = vld [vmem:[#allocation7 + $0x18] sm:$0xff]
    %v2023 = vld [vmem:[#allocation9] sm:$0x1]
    %v2025 = vlaneseq
    %v2026 = vshrl.u32 %v2025, 7
    %v2027 = vsub.s32 0, %v2026
    %v2028 = vrot.slane %v2023, %v2027
    %v2031 = vsel %vm453, %v2018, 0
    %2033 = vmatprep.subr.mxu0 0.0
    %2034 = vmatpush1.msra.mxu0 %v2019
    %2035 = vmatprep.subr.mxu0 0.0
    %2036 = vmatpush1.msra.mxu0 %v2020
    %2037 = vmatprep.subr.mxu0 0.0
    %2038 = vmatpush1.msra.mxu0 %v2021
    %2039 = vmatprep.subr.mxu0 0.0
    %2040 = vmatpush1.msra.mxu0 %v2022
    %2041 = vmatprep.subr.mxu0 0.0
    %2042 = vmatpush1.msra.mxu0 0.0
    %2043 = vmatprep.subr.mxu0 0.0
    %2044 = vmatpush1.msra.mxu0 0.0
    %2045 = vmatprep.subr.mxu0 0.0
    %2046 = vmatpush1.msra.mxu0 0.0
    %2047 = vmatprep.subr.mxu0 0.0
    %2048 = vmatpush1.msra.mxu0 0.0
    %2049 = vmatprep.subr.mxu0 0.0
    %2050 = vmatpush1.msra.mxu0 0.0
    %2051 = vmatprep.subr.mxu0 0.0
    %2052 = vmatpush1.msra.mxu0 0.0
    %2053 = vmatprep.subr.mxu0 0.0
    %2054 = vmatpush1.msra.mxu0 0.0
    %2055 = vmatprep.subr.mxu0 0.0
    %2056 = vmatpush1.msra.mxu0 0.0
    %2057 = vmatprep.subr.mxu0 0.0
    %2058 = vmatpush1.msra.mxu0 0.0
    %2059 = vmatprep.subr.mxu0 0.0
    %2060 = vmatpush1.msra.mxu0 0.0
    %2061 = vmatprep.subr.mxu0 0.0
    %2062 = vmatpush1.msra.mxu0 0.0
    %2063 = vmatprep.subr.mxu0 0.0
    %2064 = vmatpush1.msra.mxu0 0.0
    %2065 = vmatprep.subr.mxu0 0.0
    %2066 = vmatpush1.msra.mxu0 0.0
    %2067 = vmatprep.subr.mxu0 0.0
    %2068 = vmatpush1.msra.mxu0 0.0
    %2069 = vmatprep.subr.mxu0 0.0
    %2070 = vmatpush1.msra.mxu0 0.0
    %2071 = vmatprep.subr.mxu0 0.0
    %2072 = vmatpush1.msra.mxu0 0.0
    %2073 = vmatprep.subr.mxu0 0.0
    %2074 = vmatpush1.msra.mxu0 0.0
    %2075 = vmatprep.subr.mxu0 0.0
    %2076 = vmatpush1.msra.mxu0 0.0
    %2077 = vmatprep.subr.mxu0 0.0
    %2078 = vmatpush1.msra.mxu0 0.0
    %2079 = vmatprep.subr.mxu0 0.0
    %2080 = vmatpush1.msra.mxu0 0.0
    %2081 = vmatprep.subr.mxu0 0.0
    %2082 = vmatpush1.msra.mxu0 0.0
    %2083 = vmatprep.subr.mxu0 0.0
    %2084 = vmatpush1.msra.mxu0 0.0
    %2085 = vmatprep.subr.mxu0 0.0
    %2086 = vmatpush1.msra.mxu0 0.0
    %2087 = vmatprep.subr.mxu0 0.0
    %2088 = vmatpush1.msra.mxu0 0.0
    %2089 = vmatprep.subr.mxu0 0.0
    %2090 = vmatpush1.msra.mxu0 0.0
    %2091 = vmatprep.subr.mxu0 0.0
    %2092 = vmatpush1.msra.mxu0 0.0
    %2093 = vmatprep.subr.mxu0 0.0
    %2094 = vmatpush1.msra.mxu0 0.0
    %2095 = vmatprep.subr.mxu0 0.0
    %2096 = vmatpush1.msra.mxu0 0.0
    %2097 = vmatprep.mubr.f32.mxu0 0.0
    %2098 = vmatmul.mubr.f32.gmra.mrb[0].mxu0 %v2031
    %v2099 = vpop.f32.mrb[0].mxu0
    %v2100 = vadd.f32 %v2028, %v2099
    %v2101 = vpop.f32.mrb[0].mxu0
    %2102 = vdwg.mxu0
    %v2103 = vmax.f32 %v2100, 0.0
    %v2104 = vld [vmem:[#allocation10] sm:$0xff]
    %v2105 = vld [vmem:[#allocation10 + $0x8] sm:$0xff]
    %v2106 = vld [vmem:[#allocation10 + $0x10] sm:$0xff]
    %v2107 = vld [vmem:[#allocation10 + $0x18] sm:$0xff]
    %v2108 = vld [vmem:[#allocation12] sm:$0x1]
    %v2110 = vlaneseq
    %v2111 = vshrl.u32 %v2110, 7
    %v2112 = vsub.s32 0, %v2111
    %v2113 = vrot.slane %v2108, %v2112
    %v2116 = vsel %vm453, %v2103, 0
    %2118 = vmatprep.subr.mxu0 0.0
    %2119 = vmatpush1.msra.mxu0 %v2104
    %2120 = vmatprep.subr.mxu0 0.0
    %2121 = vmatpush1.msra.mxu0 %v2105
    %2122 = vmatprep.subr.mxu0 0.0
    %2123 = vmatpush1.msra.mxu0 %v2106
    %2124 = vmatprep.subr.mxu0 0.0
    %2125 = vmatpush1.msra.mxu0 %v2107
    %2126 = vmatprep.subr.mxu0 0.0
    %2127 = vmatpush1.msra.mxu0 0.0
    %2128 = vmatprep.subr.mxu0 0.0
    %2129 = vmatpush1.msra.mxu0 0.0
    %2130 = vmatprep.subr.mxu0 0.0
    %2131 = vmatpush1.msra.mxu0 0.0
    %2132 = vmatprep.subr.mxu0 0.0
    %2133 = vmatpush1.msra.mxu0 0.0
    %2134 = vmatprep.subr.mxu0 0.0
    %2135 = vmatpush1.msra.mxu0 0.0
    %2136 = vmatprep.subr.mxu0 0.0
    %2137 = vmatpush1.msra.mxu0 0.0
    %2138 = vmatprep.subr.mxu0 0.0
    %2139 = vmatpush1.msra.mxu0 0.0
    %2140 = vmatprep.subr.mxu0 0.0
    %2141 = vmatpush1.msra.mxu0 0.0
    %2142 = vmatprep.subr.mxu0 0.0
    %2143 = vmatpush1.msra.mxu0 0.0
    %2144 = vmatprep.subr.mxu0 0.0
    %2145 = vmatpush1.msra.mxu0 0.0
    %2146 = vmatprep.subr.mxu0 0.0
    %2147 = vmatpush1.msra.mxu0 0.0
    %2148 = vmatprep.subr.mxu0 0.0
    %2149 = vmatpush1.msra.mxu0 0.0
    %2150 = vmatprep.subr.mxu0 0.0
    %2151 = vmatpush1.msra.mxu0 0.0
    %2152 = vmatprep.subr.mxu0 0.0
    %2153 = vmatpush1.msra.mxu0 0.0
    %2154 = vmatprep.subr.mxu0 0.0
    %2155 = vmatpush1.msra.mxu0 0.0
    %2156 = vmatprep.subr.mxu0 0.0
    %2157 = vmatpush1.msra.mxu0 0.0
    %2158 = vmatprep.subr.mxu0 0.0
    %2159 = vmatpush1.msra.mxu0 0.0
    %2160 = vmatprep.subr.mxu0 0.0
    %2161 = vmatpush1.msra.mxu0 0.0
    %2162 = vmatprep.subr.mxu0 0.0
    %2163 = vmatpush1.msra.mxu0 0.0
    %2164 = vmatprep.subr.mxu0 0.0
    %2165 = vmatpush1.msra.mxu0 0.0
    %2166 = vmatprep.subr.mxu0 0.0
    %2167 = vmatpush1.msra.mxu0 0.0
    %2168 = vmatprep.subr.mxu0 0.0
    %2169 = vmatpush1.msra.mxu0 0.0
    %2170 = vmatprep.subr.mxu0 0.0
    %2171 = vmatpush1.msra.mxu0 0.0
    %2172 = vmatprep.subr.mxu0 0.0
    %2173 = vmatpush1.msra.mxu0 0.0
    %2174 = vmatprep.subr.mxu0 0.0
    %2175 = vmatpush1.msra.mxu0 0.0
    %2176 = vmatprep.subr.mxu0 0.0
    %2177 = vmatpush1.msra.mxu0 0.0
    %2178 = vmatprep.subr.mxu0 0.0
    %2179 = vmatpush1.msra.mxu0 0.0
    %2180 = vmatprep.subr.mxu0 0.0
    %2181 = vmatpush1.msra.mxu0 0.0
    %2182 = vmatprep.mubr.f32.mxu0 0.0
    %2183 = vmatmul.mubr.f32.gmra.mrb[0].mxu0 %v2116
    %v2184 = vpop.f32.mrb[0].mxu0
    %v2185 = vadd.f32 %v2113, %v2184
    %v2186 = vpop.f32.mrb[0].mxu0
    %2187 = vdwg.mxu0
    %v2188 = vmax.f32 %v2185, 0.0
    %v2189 = vld [vmem:[%s16] sm:$0xff]
    %v2190 = vld [vmem:[%s16 + $0x8] sm:$0xff]
    %v2191 = vld [vmem:[%s16 + $0x10] sm:$0xff]
    %v2192 = vld [vmem:[%s16 + $0x18] sm:$0xff]
    %v2193 = vld [vmem:[#allocation13] sm:$0x1]
    %v2195 = vlaneseq
    %v2196 = vshrl.u32 %v2195, 7
    %v2197 = vsub.s32 0, %v2196
    %v2198 = vrot.slane %v2193, %v2197
    %v2201 = vsel %vm453, %v2188, 0
    %2203 = vmatprep.subr.mxu0 0.0
    %2204 = vmatpush1.msra.mxu0 %v2189
    %2205 = vmatprep.subr.mxu0 0.0
    %2206 = vmatpush1.msra.mxu0 %v2190
    %2207 = vmatprep.subr.mxu0 0.0
    %2208 = vmatpush1.msra.mxu0 %v2191
    %2209 = vmatprep.subr.mxu0 0.0
    %2210 = vmatpush1.msra.mxu0 %v2192
    %2211 = vmatprep.subr.mxu0 0.0
    %2212 = vmatpush1.msra.mxu0 0.0
    %2213 = vmatprep.subr.mxu0 0.0
    %2214 = vmatpush1.msra.mxu0 0.0
    %2215 = vmatprep.subr.mxu0 0.0
    %2216 = vmatpush1.msra.mxu0 0.0
    %2217 = vmatprep.subr.mxu0 0.0
    %2218 = vmatpush1.msra.mxu0 0.0
    %2219 = vmatprep.subr.mxu0 0.0
    %2220 = vmatpush1.msra.mxu0 0.0
    %2221 = vmatprep.subr.mxu0 0.0
    %2222 = vmatpush1.msra.mxu0 0.0
    %2223 = vmatprep.subr.mxu0 0.0
    %2224 = vmatpush1.msra.mxu0 0.0
    %2225 = vmatprep.subr.mxu0 0.0
    %2226 = vmatpush1.msra.mxu0 0.0
    %2227 = vmatprep.subr.mxu0 0.0
    %2228 = vmatpush1.msra.mxu0 0.0
    %2229 = vmatprep.subr.mxu0 0.0
    %2230 = vmatpush1.msra.mxu0 0.0
    %2231 = vmatprep.subr.mxu0 0.0
    %2232 = vmatpush1.msra.mxu0 0.0
    %2233 = vmatprep.subr.mxu0 0.0
    %2234 = vmatpush1.msra.mxu0 0.0
    %2235 = vmatprep.subr.mxu0 0.0
    %2236 = vmatpush1.msra.mxu0 0.0
    %2237 = vmatprep.subr.mxu0 0.0
    %2238 = vmatpush1.msra.mxu0 0.0
    %2239 = vmatprep.subr.mxu0 0.0
    %2240 = vmatpush1.msra.mxu0 0.0
    %2241 = vmatprep.subr.mxu0 0.0
    %2242 = vmatpush1.msra.mxu0 0.0
    %2243 = vmatprep.subr.mxu0 0.0
    %2244 = vmatpush1.msra.mxu0 0.0
    %2245 = vmatprep.subr.mxu0 0.0
    %2246 = vmatpush1.msra.mxu0 0.0
    %2247 = vmatprep.subr.mxu0 0.0
    %2248 = vmatpush1.msra.mxu0 0.0
    %2249 = vmatprep.subr.mxu0 0.0
    %2250 = vmatpush1.msra.mxu0 0.0
    %2251 = vmatprep.subr.mxu0 0.0
    %2252 = vmatpush1.msra.mxu0 0.0
    %2253 = vmatprep.subr.mxu0 0.0
    %2254 = vmatpush1.msra.mxu0 0.0
    %2255 = vmatprep.subr.mxu0 0.0
    %2256 = vmatpush1.msra.mxu0 0.0
    %2257 = vmatprep.subr.mxu0 0.0
    %2258 = vmatpush1.msra.mxu0 0.0
    %2259 = vmatprep.subr.mxu0 0.0
    %2260 = vmatpush1.msra.mxu0 0.0
    %2261 = vmatprep.subr.mxu0 0.0
    %2262 = vmatpush1.msra.mxu0 0.0
    %2263 = vmatprep.subr.mxu0 0.0
    %2264 = vmatpush1.msra.mxu0 0.0
    %2265 = vmatprep.subr.mxu0 0.0
    %2266 = vmatpush1.msra.mxu0 0.0
    %2267 = vmatprep.mubr.f32.mxu0 0.0
    %2268 = vmatmul.mubr.f32.gmra.mrb[0].mxu0 %v2201
    %v2269 = vpop.f32.mrb[0].mxu0
    %v2270 = vadd.f32 %v2198, %v2269
    %v2271 = vpop.f32.mrb[0].mxu0
    %2272 = vdwg.mxu0
    %2274 = vset.pattern.permute.xlu0 0
    %2275 = vperm.xlu0 %2274, %v2270
    %v2276 = vpop.permute.xlu0 %2275
    %v2278 = vmul.f32 %v1831, %v2276
    %2279 = vset.pattern.permute.xlu0 1
    %2280 = vperm.xlu0 %2279, %v2270
    %v2281 = vpop.permute.xlu0 %2280
    %v2283 = vmul.f32 %v1831, %v2281
    %2285 = vrot.lane.b32.xlu0 %v2283, 96
    %v2286 = vpop.permute.xlu0 %2285
    %v2288 = vadd.f32 %v2278, %v2286
    %v2289 = vld [vmem:[%s18] sm:$0xff]
    %v2290 = vld [vmem:[%s18 + $0x8] sm:$0xff]
    %v2291 = vld [vmem:[%s18 + $0x10] sm:$0xff]
    %v2292 = vld [vmem:[%s18 + $0x18] sm:$0xff]
    %v2293 = vld [vmem:[%s19] sm:$0x1]
    %v2295 = vlaneseq
    %v2296 = vshrl.u32 %v2295, 7
    %v2297 = vsub.s32 0, %v2296
    %v2298 = vrot.slane %v2293, %v2297
    %v2301 = vsel %vm453, %v2288, 0
    %2303 = vmatprep.subr.mxu0 0.0
    %2304 = vmatpush1.msra.mxu0 %v2289
    %2305 = vmatprep.subr.mxu0 0.0
    %2306 = vmatpush1.msra.mxu0 %v2290
    %2307 = vmatprep.subr.mxu0 0.0
    %2308 = vmatpush1.msra.mxu0 %v2291
    %2309 = vmatprep.subr.mxu0 0.0
    %2310 = vmatpush1.msra.mxu0 %v2292
    %2311 = vmatprep.subr.mxu0 0.0
    %2312 = vmatpush1.msra.mxu0 0.0
    %2313 = vmatprep.subr.mxu0 0.0
    %2314 = vmatpush1.msra.mxu0 0.0
    %2315 = vmatprep.subr.mxu0 0.0
    %2316 = vmatpush1.msra.mxu0 0.0
    %2317 = vmatprep.subr.mxu0 0.0
    %2318 = vmatpush1.msra.mxu0 0.0
    %2319 = vmatprep.subr.mxu0 0.0
    %2320 = vmatpush1.msra.mxu0 0.0
    %2321 = vmatprep.subr.mxu0 0.0
    %2322 = vmatpush1.msra.mxu0 0.0
    %2323 = vmatprep.subr.mxu0 0.0
    %2324 = vmatpush1.msra.mxu0 0.0
    %2325 = vmatprep.subr.mxu0 0.0
    %2326 = vmatpush1.msra.mxu0 0.0
    %2327 = vmatprep.subr.mxu0 0.0
    %2328 = vmatpush1.msra.mxu0 0.0
    %2329 = vmatprep.subr.mxu0 0.0
    %2330 = vmatpush1.msra.mxu0 0.0
    %2331 = vmatprep.subr.mxu0 0.0
    %2332 = vmatpush1.msra.mxu0 0.0
    %2333 = vmatprep.subr.mxu0 0.0
    %2334 = vmatpush1.msra.mxu0 0.0
    %2335 = vmatprep.subr.mxu0 0.0
    %2336 = vmatpush1.msra.mxu0 0.0
    %2337 = vmatprep.subr.mxu0 0.0
    %2338 = vmatpush1.msra.mxu0 0.0
    %2339 = vmatprep.subr.mxu0 0.0
    %2340 = vmatpush1.msra.mxu0 0.0
    %2341 = vmatprep.subr.mxu0 0.0
    %2342 = vmatpush1.msra.mxu0 0.0
    %2343 = vmatprep.subr.mxu0 0.0
    %2344 = vmatpush1.msra.mxu0 0.0
    %2345 = vmatprep.subr.mxu0 0.0
    %2346 = vmatpush1.msra.mxu0 0.0
    %2347 = vmatprep.subr.mxu0 0.0
    %2348 = vmatpush1.msra.mxu0 0.0
    %2349 = vmatprep.subr.mxu0 0.0
    %2350 = vmatpush1.msra.mxu0 0.0
    %2351 = vmatprep.subr.mxu0 0.0
    %2352 = vmatpush1.msra.mxu0 0.0
    %2353 = vmatprep.subr.mxu0 0.0
    %2354 = vmatpush1.msra.mxu0 0.0
    %2355 = vmatprep.subr.mxu0 0.0
    %2356 = vmatpush1.msra.mxu0 0.0
    %2357 = vmatprep.subr.mxu0 0.0
    %2358 = vmatpush1.msra.mxu0 0.0
    %2359 = vmatprep.subr.mxu0 0.0
    %2360 = vmatpush1.msra.mxu0 0.0
    %2361 = vmatprep.subr.mxu0 0.0
    %2362 = vmatpush1.msra.mxu0 0.0
    %2363 = vmatprep.subr.mxu0 0.0
    %2364 = vmatpush1.msra.mxu0 0.0
    %2365 = vmatprep.subr.mxu0 0.0
    %2366 = vmatpush1.msra.mxu0 0.0
    %2367 = vmatprep.mubr.f32.mxu0 0.0
    %2368 = vmatmul.mubr.f32.gmra.mrb[0].mxu0 %v2301
    %v2369 = vpop.f32.mrb[0].mxu0
    %v2370 = vadd.f32 %v2298, %v2369
    %v2371 = vpop.f32.mrb[0].mxu0
    %2372 = vdwg.mxu0
    %2373 = vst [vmem:[%s20] sm:$0xff] %v2370
    // Predicated region
    $region114: #{attention_forward.1} parent=1 // pred_check
      _
    $region115: #{attention_forward.1} parent=1 // pred_check_branch
      %2375 = sbr.rel (0) target = $region117
    $region116: #{attention_forward.1} parent=1 // pred_region
      _
    $region117: #{attention_forward.1} parent=1 // pred_fallthru
      _
    // Predicated region
    $region118: #{attention_forward.1} parent=1 // pred_check
      _
    $region119: #{attention_forward.1} parent=1 // pred_check_branch
      %2377 = sbr.rel (0) target = $region121
    $region120: #{attention_forward.1} parent=1 // pred_region
      _
    $region121: #{attention_forward.1} parent=1 // pred_fallthru
      _
    %2378 = vsyncpa [#allocation3], 1
    %2379 = vsyncpa [#allocation5], 1
    %2380 = vsyncpa [#allocation8], 1
    %2381 = vsyncpa [#allocation11], 1
    %2382 = vsyncpa [#allocation14], 1

</llo_original>
